<compile_context>
chip_gen: v7x
topology: tpu7x:2x2x1
jax: 0.10.0
libtpu: 0.0.40
codegen_flags: <defaults>
</compile_context>

<pallas_src>
import functools

import jax
import jax.numpy as jnp
from jax.experimental import pallas as pl
from jax.experimental.pallas import tpu as pltpu


MXU_DTYPE = jnp.bfloat16   # matmul operand dtype (f32 accumulate); jnp.float32 to disable


# ----------------------------------------------------------------------------
# Pallas kernels (all operate on per-batch (C, HW) tiles, HW in lanes)
# ----------------------------------------------------------------------------
def _conv1x1_pair_kernel(x_ref, w_ref, s_ref, b_ref, o_ref):
    """conv1_1 and conv1_2 (both 1x1 + BN + ReLU) as one stacked matmul.

    x_ref: (1, C, HW)   w_ref: (2C, C)   s/b: (2C, 1)   o_ref: (1, 2C, HW)
    """
    y = jnp.dot(w_ref[...], x_ref[0], preferred_element_type=jnp.float32)
    y = y * s_ref[...] + b_ref[...]
    o_ref[...] = jnp.maximum(y, 0.0)[None].astype(o_ref.dtype)


def _branch_kernel(t20, t21, t22, t23, t24,
                   w20, w21, w22, w23, w24,
                   s_ref, b_ref,
                   o20, o21, o22, o23, o24, *, offs, relus):
    """conv2_0..conv2_4 (+BN, optional fused ReLU) in one launch.

    Each conv is a single matmul: w (Cout, K) @ taps (K, HWout), K = taps*Cin.
    relus fuses the ReLU that torch applies to the concat feeding conv2_5
    (ReLU commutes with concat and nearest-repeat).
    """
    s = s_ref[...]
    b = b_ref[...]
    for t_ref, w_ref, o_ref, (lo, hi), relu in zip(
            (t20, t21, t22, t23, t24), (w20, w21, w22, w23, w24),
            (o20, o21, o22, o23, o24), offs, relus):
        y = jnp.dot(w_ref[...], t_ref[0], preferred_element_type=jnp.float32)
        y = y * s[lo:hi] + b[lo:hi]
        if relu:
            y = jnp.maximum(y, 0.0)
        o_ref[...] = y[None].astype(o_ref.dtype)


def _tail_kernel(t25_ref, t26_ref, x_ref, w25_ref, w26_ref, w3a_ref, w3b_ref,
                 s_ref, b_ref, o_ref, *, c):
    """Fused tail: conv2_5, conv2_6, x2 = x*x2b, conv3 + BN, residual, ReLU."""
    s = s_ref[...]
    b = b_ref[...]
    x1b = jnp.dot(w25_ref[...], t25_ref[0], preferred_element_type=jnp.float32)
    x1b = jnp.maximum(x1b * s[0:c] + b[0:c], 0.0)                 # conv2_5+BN+ReLU
    x2b = jnp.dot(w26_ref[...], t26_ref[0], preferred_element_type=jnp.float32)
    x2b = jnp.maximum(x2b * s[c:2 * c] + b[c:2 * c], 0.0)         # conv2_6+BN+ReLU
    xin = x_ref[0].astype(jnp.float32)
    x2c = xin * x2b                                               # x * x2
    w3a = w3a_ref[...]
    w3b = w3b_ref[...]
    # conv3 on cat([x1b, x2c], dim=channels) split into two dots (K tiny at C=8).
    # TODO(synk): for larger C stack [x1b; x2c] along sublanes and use one (C,2C) dot.
    y = jnp.dot(w3a, x1b.astype(w3a.dtype), preferred_element_type=jnp.float32)
    y = y + jnp.dot(w3b, x2c.astype(w3b.dtype), preferred_element_type=jnp.float32)
    y = y * s[2 * c:3 * c] + b[2 * c:3 * c]                       # BN of conv3
    o_ref[...] = jnp.maximum(xin + y, 0.0)[None].astype(o_ref.dtype)


# ----------------------------------------------------------------------------
# Layout helpers (pure JAX glue)
# ----------------------------------------------------------------------------
def _w_mat(w_oihw):
    """PyTorch OIHW conv weight -> (Cout, Kh*Kw*Cin), matching im2col tap order."""
    o, i, kh, kw = w_oihw.shape
    return jnp.transpose(w_oihw, (0, 2, 3, 1)).reshape(o, kh * kw * i)


def _im2col_cf(x, kh, kw, ph, pw, dtype=None):
    """Channels-first im2col with taps folded into the contraction axis.

    x: (N, C, H, W) -> (N, Kh*Kw*C, Hout*Wout); row index = tap*C + cin,
    taps ordered row-major (dy outer, dx inner) to match _w_mat.
    """
    n, c, h, w = x.shape
    if dtype is not None:
        x = x.astype(dtype)
    xp = jnp.pad(x, ((0, 0), (0, 0), (ph, ph), (pw, pw)))
    hout = h + 2 * ph - kh + 1
    wout = w + 2 * pw - kw + 1
    cols = [xp[:, :, dy:dy + hout, dx:dx + wout].reshape(n, c, hout * wout)
            for dy in range(kh) for dx in range(kw)]
    # TODO(synk): at production sizes, form the windows inside the kernel from the
    #             padded block instead of materializing Kh*Kw x the bytes in HBM.
    return jnp.concatenate(cols, axis=1)


# ----------------------------------------------------------------------------
# Parameters (deterministic synthetic init; BN folded to scale/bias, eps=1e-5)
# ----------------------------------------------------------------------------
def init_params(key, c, eps=1e-5):
    def conv_w(k, cout, cin, kh, kw):
        fan_in = kh * kw * cin
        return jax.random.normal(k, (cout, cin, kh, kw), jnp.float32) * (2.0 / fan_in) ** 0.5

    def bn(k, cout):
        k1, k2, k3, k4 = jax.random.split(k, 4)
        gamma = 1.0 + 0.1 * jax.random.normal(k1, (cout,), jnp.float32)
        beta = 0.1 * jax.random.normal(k2, (cout,), jnp.float32)
        mean = 0.1 * jax.random.normal(k3, (cout,), jnp.float32)
        var = 1.0 + 0.1 * jax.random.uniform(k4, (cout,), jnp.float32)
        scale = gamma / jnp.sqrt(var + eps)
        bias = beta - mean * scale
        return scale, bias

    specs = {
        'c11': (c, c, 1, 1), 'c12': (c, c, 1, 1),
        'c20': (c, c, 3, 3),
        'c21': (c // 2, c, 3, 3), 'c22': (c // 2, c, 3, 3),
        'c23': (c, c, 1, 3), 'c24': (c, c, 3, 1),
        'c25': (c, 2 * c, 3, 3), 'c26': (c, c, 3, 3),
        'c3': (c, 2 * c, 1, 1),
    }
    keys = jax.random.split(key, 2 * len(specs))
    wm, sc, bi = {}, {}, {}
    for idx, (name, (co, ci, kh, kw)) in enumerate(specs.items()):
        wm[name] = _w_mat(conv_w(keys[2 * idx], co, ci, kh, kw))
        sc[name], bi[name] = bn(keys[2 * idx + 1], co)

    def col_s(*names):
        return jnp.concatenate([sc[nm] for nm in names])[:, None]

    def col_b(*names):
        return jnp.concatenate([bi[nm] for nm in names])[:, None]

    p = {
        # kernel 1: conv1_1 / conv1_2 stacked along Cout
        'w1': jnp.concatenate([wm['c11'], wm['c12']], axis=0).astype(MXU_DTYPE),
        's1': col_s('c11', 'c12'), 'b1': col_b('c11', 'c12'),
        # kernel 2: conv2_0 .. conv2_4
        'w20': wm['c20'].astype(MXU_DTYPE), 'w21': wm['c21'].astype(MXU_DTYPE),
        'w22': wm['c22'].astype(MXU_DTYPE), 'w23': wm['c23'].astype(MXU_DTYPE),
        'w24': wm['c24'].astype(MXU_DTYPE),
        's2': col_s('c20', 'c21', 'c22', 'c23', 'c24'),
        'b2': col_b('c20', 'c21', 'c22', 'c23', 'c24'),
        # kernel 3: conv2_5, conv2_6 and conv3 split along its torch.cat input order
        'w25': wm['c25'].astype(MXU_DTYPE), 'w26': wm['c26'].astype(MXU_DTYPE),
        'w3a': wm['c3'][:, :c].astype(MXU_DTYPE),   # applied to x1 (= conv2_5 output)
        'w3b': wm['c3'][:, c:].astype(MXU_DTYPE),   # applied to x * conv2_6 output
        's3': col_s('c25', 'c26', 'c3'), 'b3': col_b('c25', 'c26', 'c3'),
    }
    # NOTE: the module also defines self.gamma = zeros(1) but never uses it in forward.
    return p


# ----------------------------------------------------------------------------
# StripPooling2 forward
# ----------------------------------------------------------------------------
def strip_pooling2(x, p, pool_size):
    # x: (N, C, H, W)  channels-first, like PyTorch
    n, c, h, w = x.shape
    p1, p2 = pool_size
    assert h % p1 == 0 and w % p1 == 0 and h % p2 == 0 and w % p2 == 0
    hw = h * w
    half = c // 2
    par = pltpu.CompilerParams(dimension_semantics=("parallel",))

    # ---- kernel 1: conv1_1 & conv1_2 (1x1 + BN + ReLU) fused -----------------
    x_flat = x.reshape(n, c, hw)
    y12 = pl.pallas_call(
        _conv1x1_pair_kernel,
        out_shape=jax.ShapeDtypeStruct((n, 2 * c, hw), jnp.float32),
        grid=(n,),
        in_specs=[pl.BlockSpec((1, c, hw), lambda i: (i, 0, 0)),
                  pl.BlockSpec((2 * c, c), lambda i: (0, 0)),
                  pl.BlockSpec((2 * c, 1), lambda i: (0, 0)),
                  pl.BlockSpec((2 * c, 1), lambda i: (0, 0))],
        out_specs=pl.BlockSpec((1, 2 * c, hw), lambda i: (i, 0, 0)),
        compiler_params=par,
    )(x_flat.astype(MXU_DTYPE), p['w1'], p['s1'], p['b1'])
    x1 = y12[:, :c].reshape(n, c, h, w)
    x2 = y12[:, c:].reshape(n, c, h, w)

    # ---- JAX glue: adaptive avg pools (exact block means) & strip pools ------
    x1_p1 = x1.reshape(n, c, p1, h // p1, p1, w // p1).mean(axis=(3, 5))   # (n,c,p1,p1)
    x1_p2 = x1.reshape(n, c, p2, h // p2, p2, w // p2).mean(axis=(3, 5))   # (n,c,p2,p2)
    x2_h = x2.mean(axis=2, keepdims=True)                                  # (n,c,1,w)
    x2_w = x2.mean(axis=3, keepdims=True)                                  # (n,c,h,1)

    # ---- im2col with taps folded into the contraction axis -------------------
    t20 = _im2col_cf(x1, 3, 3, 1, 1, MXU_DTYPE)       # (n, 9c, hw)
    t21 = _im2col_cf(x1_p1, 3, 3, 1, 1, MXU_DTYPE)    # (n, 9c, p1*p1)
    t22 = _im2col_cf(x1_p2, 3, 3, 1, 1, MXU_DTYPE)    # (n, 9c, p2*p2)
    t23 = _im2col_cf(x2_h, 1, 3, 0, 1, MXU_DTYPE)     # (n, 3c, w)
    t24 = _im2col_cf(x2_w, 3, 1, 1, 0, MXU_DTYPE)     # (n, 3c, h)

    # ---- kernel 2: conv2_0..conv2_4 (+BN) in one launch -----------------------
    couts = (c, half, half, c, c)
    offs, lo = [], 0
    for co in couts:
        offs.append((lo, lo + co))
        lo += co
    relus = (True, True, True, False, False)          # ReLU fused where it commutes
    taps2 = (t20, t21, t22, t23, t24)
    weights2 = (p['w20'], p['w21'], p['w22'], p['w23'], p['w24'])
    shapes2 = ((c, hw), (half, p1 * p1), (half, p2 * p2), (c, w), (c, h))

    outs2 = pl.pallas_call(
        functools.partial(_branch_kernel, offs=tuple(offs), relus=relus),
        out_shape=tuple(jax.ShapeDtypeStruct((n,) + s, jnp.float32) for s in shapes2),
        grid=(n,),
        in_specs=[pl.BlockSpec((1,) + t.shape[1:], lambda i: (i, 0, 0)) for t in taps2]
                + [pl.BlockSpec(wt.shape, lambda i: (0, 0)) for wt in weights2]
                + [pl.BlockSpec(p['s2'].shape, lambda i: (0, 0)),
                   pl.BlockSpec(p['b2'].shape, lambda i: (0, 0))],
        out_specs=[pl.BlockSpec((1,) + s, lambda i: (i, 0, 0)) for s in shapes2],
        compiler_params=par,
    )(*taps2, *weights2, p['s2'], p['b2'])
    x2_1, y21, y22, y23, y24 = outs2

    # ---- JAX glue: nearest interpolation == integer repeat / broadcast --------
    x2_2 = jnp.repeat(jnp.repeat(y21.reshape(n, half, p1, p1), h // p1, axis=2),
                      w // p1, axis=3)
    x2_3 = jnp.repeat(jnp.repeat(y22.reshape(n, half, p2, p2), h // p2, axis=2),
                      w // p2, axis=3)
    x2_4 = jnp.broadcast_to(y23.reshape(n, c, 1, w), (n, c, h, w))
    x2_5 = jnp.broadcast_to(y24.reshape(n, c, h, 1), (n, c, h, w))

    cat_in = jnp.concatenate([x2_1.reshape(n, c, h, w), x2_2, x2_3], axis=1)  # already ReLU'd
    sum_in = jnp.maximum(x2_4 + x2_5, 0.0)            # F.relu_(x2_5 + x2_4), applied once

    t25 = _im2col_cf(cat_in, 3, 3, 1, 1, MXU_DTYPE)   # (n, 18c, hw)
    t26 = _im2col_cf(sum_in, 3, 3, 1, 1, MXU_DTYPE)   # (n, 9c, hw)

    # ---- kernel 3: conv2_5, conv2_6, x*x2, conv3+BN, residual, final ReLU -----
    out = pl.pallas_call(
        functools.partial(_tail_kernel, c=c),
        out_shape=jax.ShapeDtypeStruct((n, c, hw), x.dtype),
        grid=(n,),
        in_specs=[pl.BlockSpec((1, t25.shape[1], hw), lambda i: (i, 0, 0)),
                  pl.BlockSpec((1, t26.shape[1], hw), lambda i: (i, 0, 0)),
                  pl.BlockSpec((1, c, hw), lambda i: (i, 0, 0)),
                  pl.BlockSpec(p['w25'].shape, lambda i: (0, 0)),
                  pl.BlockSpec(p['w26'].shape, lambda i: (0, 0)),
                  pl.BlockSpec((c, c), lambda i: (0, 0)),
                  pl.BlockSpec((c, c), lambda i: (0, 0)),
                  pl.BlockSpec((3 * c, 1), lambda i: (0, 0)),
                  pl.BlockSpec((3 * c, 1), lambda i: (0, 0))],
        out_specs=pl.BlockSpec((1, c, hw), lambda i: (i, 0, 0)),
        compiler_params=par,
    )(t25, t26, x_flat, p['w25'], p['w26'], p['w3a'], p['w3b'], p['s3'], p['b3'])
    return out.reshape(n, c, h, w)


# ----------------------------------------------------------------------------
if __name__ == "__main__":
    key = jax.random.PRNGKey(0)
    kx, kp = jax.random.split(key)

    N, C, H, W = 2, 8, 16, 16            # in_channels = 8
    pool_size = (4, 2)                    # pool sizes that divide H, W

    x = jax.random.normal(kx, (N, C, H, W), jnp.float32)   # NCHW (PyTorch layout)
    params = init_params(kp, C)

    fwd = jax.jit(functools.partial(strip_pooling2, pool_size=pool_size))
    out = fwd(x, params)
    jax.block_until_ready(out)

    assert out.shape == (N, C, H, W)
    assert bool(jnp.all(out >= 0.0))      # final relu
    print("KERNEL_OK")
</pallas_src>

<mosaic_0001>
module attributes {stable_mosaic.version = 11 : i64} {
  func.func @_conv1x1_pair_kernel(%arg0: i32, %arg1: memref<1x8x256xbf16, #tpu.memory_space<vmem>>, %arg2: memref<16x8xbf16, #tpu.memory_space<vmem>>, %arg3: memref<16x1xf32, #tpu.memory_space<vmem>>, %arg4: memref<16x1xf32, #tpu.memory_space<vmem>>, %arg5: memref<1x16x256xf32, #tpu.memory_space<vmem>>) attributes {dimension_semantics = [#tpu.dimension_semantics<parallel>], iteration_bounds = array<i64: 2>, scalar_prefetch = 0 : i64, scratch_operands = 0 : i64, tpu.core_type = #tpu.core_type<tc>, window_params = [{transform_indices = @transform_0, window_bounds = array<i64: 1, 8, 256>}, {pipeline_mode = #tpu.pipeline_mode<synchronous>, transform_indices = @transform_1, window_bounds = array<i64: 16, 8>}, {pipeline_mode = #tpu.pipeline_mode<synchronous>, transform_indices = @transform_2, window_bounds = array<i64: 16, 1>}, {pipeline_mode = #tpu.pipeline_mode<synchronous>, transform_indices = @transform_3, window_bounds = array<i64: 16, 1>}, {transform_indices = @transform_4, window_bounds = array<i64: 1, 16, 256>}]} {
    %c0 = arith.constant 0 : index
    %c0_0 = arith.constant 0 : index
    %0 = vector.load %arg2[%c0, %c0_0] : memref<16x8xbf16, #tpu.memory_space<vmem>>, vector<16x8xbf16>
    %c0_1 = arith.constant 0 : index
    %c0_2 = arith.constant 0 : index
    %c0_3 = arith.constant 0 : index
    %1 = vector.load %arg1[%c0_1, %c0_2, %c0_3] : memref<1x8x256xbf16, #tpu.memory_space<vmem>>, vector<1x8x256xbf16>
    %2 = vector.shape_cast %1 : vector<1x8x256xbf16> to vector<8x256xbf16>
    %cst = arith.constant dense<0.000000e+00> : vector<16x256xf32>
    %3 = tpu.matmul %0, %2, %cst {dimension_numbers = #tpu.dot_dimension_numbers<[1], [0], [0], [1], [0, 0, 1, 1], [], []>} : vector<16x8xbf16>, vector<8x256xbf16>, vector<16x256xf32> -> vector<16x256xf32>
    %c0_4 = arith.constant 0 : index
    %c0_5 = arith.constant 0 : index
    %4 = vector.load %arg3[%c0_4, %c0_5] : memref<16x1xf32, #tpu.memory_space<vmem>>, vector<16x1xf32>
    %5 = vector.broadcast %4 : vector<16x1xf32> to vector<16x256xf32>
    %6 = arith.mulf %3, %5 : vector<16x256xf32>
    %c0_6 = arith.constant 0 : index
    %c0_7 = arith.constant 0 : index
    %7 = vector.load %arg4[%c0_6, %c0_7] : memref<16x1xf32, #tpu.memory_space<vmem>>, vector<16x1xf32>
    %8 = vector.broadcast %7 : vector<16x1xf32> to vector<16x256xf32>
    %9 = arith.addf %6, %8 : vector<16x256xf32>
    %cst_8 = arith.constant 0.000000e+00 : f32
    %10 = vector.broadcast %cst_8 : f32 to vector<16x256xf32>
    %11 = arith.maximumf %9, %10 : vector<16x256xf32>
    %12 = vector.shape_cast %11 : vector<16x256xf32> to vector<1x16x256xf32>
    %c0_9 = arith.constant 0 : index
    %c0_10 = arith.constant 0 : index
    %c0_11 = arith.constant 0 : index
    %13 = vector.load %arg5[%c0_9, %c0_10, %c0_11] : memref<1x16x256xf32, #tpu.memory_space<vmem>>, vector<1x16x256xf32>
    tpu.vector_store %arg5[%c0_9, %c0_10, %c0_11], %12 {strides = array<i32>} : memref<1x16x256xf32, #tpu.memory_space<vmem>>, vector<1x16x256xf32>,
    return
  }
  func.func @transform_0(%arg0: i32) -> (i32, i32, i32) {
    %c0_i32 = arith.constant 0 : i32
    %c0_i32_0 = arith.constant 0 : i32
    %c0_i32_1 = arith.constant 0 : i32
    return %arg0, %c0_i32, %c0_i32_0 : i32, i32, i32
  }
  func.func @transform_1(%arg0: i32) -> (i32, i32) {
    %c0_i32 = arith.constant 0 : i32
    %c0_i32_0 = arith.constant 0 : i32
    %c0_i32_1 = arith.constant 0 : i32
    return %c0_i32, %c0_i32_0 : i32, i32
  }
  func.func @transform_2(%arg0: i32) -> (i32, i32) {
    %c0_i32 = arith.constant 0 : i32
    %c0_i32_0 = arith.constant 0 : i32
    %c0_i32_1 = arith.constant 0 : i32
    return %c0_i32, %c0_i32_0 : i32, i32
  }
  func.func @transform_3(%arg0: i32) -> (i32, i32) {
    %c0_i32 = arith.constant 0 : i32
    %c0_i32_0 = arith.constant 0 : i32
    %c0_i32_1 = arith.constant 0 : i32
    return %c0_i32, %c0_i32_0 : i32, i32
  }
  func.func @transform_4(%arg0: i32) -> (i32, i32, i32) {
    %c0_i32 = arith.constant 0 : i32
    %c0_i32_0 = arith.constant 0 : i32
    %c0_i32_1 = arith.constant 0 : i32
    return %arg0, %c0_i32, %c0_i32_0 : i32, i32, i32
  }
}

module attributes {stable_mosaic.version = 11 : i64} {
  func.func @_branch_kernel(%arg0: i32, %arg1: memref<1x72x256xbf16, #tpu.memory_space<vmem>>, %arg2: memref<1x72x16xbf16, #tpu.memory_space<vmem>>, %arg3: memref<1x72x4xbf16, #tpu.memory_space<vmem>>, %arg4: memref<1x24x16xbf16, #tpu.memory_space<vmem>>, %arg5: memref<1x24x16xbf16, #tpu.memory_space<vmem>>, %arg6: memref<8x72xbf16, #tpu.memory_space<vmem>>, %arg7: memref<4x72xbf16, #tpu.memory_space<vmem>>, %arg8: memref<4x72xbf16, #tpu.memory_space<vmem>>, %arg9: memref<8x24xbf16, #tpu.memory_space<vmem>>, %arg10: memref<8x24xbf16, #tpu.memory_space<vmem>>, %arg11: memref<32x1xf32, #tpu.memory_space<vmem>>, %arg12: memref<32x1xf32, #tpu.memory_space<vmem>>, %arg13: memref<1x8x256xf32, #tpu.memory_space<vmem>>, %arg14: memref<1x4x16xf32, #tpu.memory_space<vmem>>, %arg15: memref<1x4x4xf32, #tpu.memory_space<vmem>>, %arg16: memref<1x8x16xf32, #tpu.memory_space<vmem>>, %arg17: memref<1x8x16xf32, #tpu.memory_space<vmem>>) attributes {dimension_semantics = [#tpu.dimension_semantics<parallel>], iteration_bounds = array<i64: 2>, scalar_prefetch = 0 : i64, scratch_operands = 0 : i64, tpu.core_type = #tpu.core_type<tc>, window_params = [{transform_indices = @transform_0, window_bounds = array<i64: 1, 72, 256>}, {transform_indices = @transform_1, window_bounds = array<i64: 1, 72, 16>}, {transform_indices = @transform_2, window_bounds = array<i64: 1, 72, 4>}, {transform_indices = @transform_3, window_bounds = array<i64: 1, 24, 16>}, {transform_indices = @transform_4, window_bounds = array<i64: 1, 24, 16>}, {pipeline_mode = #tpu.pipeline_mode<synchronous>, transform_indices = @transform_5, window_bounds = array<i64: 8, 72>}, {pipeline_mode = #tpu.pipeline_mode<synchronous>, transform_indices = @transform_6, window_bounds = array<i64: 4, 72>}, {pipeline_mode = #tpu.pipeline_mode<synchronous>, transform_indices = @transform_7, window_bounds = array<i64: 4, 72>}, {pipeline_mode = #tpu.pipeline_mode<synchronous>, transform_indices = @transform_8, window_bounds = array<i64: 8, 24>}, {pipeline_mode = #tpu.pipeline_mode<synchronous>, transform_indices = @transform_9, window_bounds = array<i64: 8, 24>}, {pipeline_mode = #tpu.pipeline_mode<synchronous>, transform_indices = @transform_10, window_bounds = array<i64: 32, 1>}, {pipeline_mode = #tpu.pipeline_mode<synchronous>, transform_indices = @transform_11, window_bounds = array<i64: 32, 1>}, {transform_indices = @transform_12, window_bounds = array<i64: 1, 8, 256>}, {transform_indices = @transform_13, window_bounds = array<i64: 1, 4, 16>}, {transform_indices = @transform_14, window_bounds = array<i64: 1, 4, 4>}, {transform_indices = @transform_15, window_bounds = array<i64: 1, 8, 16>}, {transform_indices = @transform_16, window_bounds = array<i64: 1, 8, 16>}]} {
    %c0 = arith.constant 0 : index
    %c0_0 = arith.constant 0 : index
    %0 = vector.load %arg11[%c0, %c0_0] : memref<32x1xf32, #tpu.memory_space<vmem>>, vector<32x1xf32>
    %c0_1 = arith.constant 0 : index
    %c0_2 = arith.constant 0 : index
    %1 = vector.load %arg12[%c0_1, %c0_2] : memref<32x1xf32, #tpu.memory_space<vmem>>, vector<32x1xf32>
    %c0_3 = arith.constant 0 : index
    %c0_4 = arith.constant 0 : index
    %2 = vector.load %arg6[%c0_3, %c0_4] : memref<8x72xbf16, #tpu.memory_space<vmem>>, vector<8x72xbf16>
    %c0_5 = arith.constant 0 : index
    %c0_6 = arith.constant 0 : index
    %c0_7 = arith.constant 0 : index
    %3 = vector.load %arg1[%c0_5, %c0_6, %c0_7] : memref<1x72x256xbf16, #tpu.memory_space<vmem>>, vector<1x72x256xbf16>
    %4 = vector.shape_cast %3 : vector<1x72x256xbf16> to vector<72x256xbf16>
    %cst = arith.constant dense<0.000000e+00> : vector<8x256xf32>
    %5 = tpu.matmul %2, %4, %cst {dimension_numbers = #tpu.dot_dimension_numbers<[1], [0], [0], [1], [0, 0, 1, 1], [], []>} : vector<8x72xbf16>, vector<72x256xbf16>, vector<8x256xf32> -> vector<8x256xf32>
    %6 = vector.extract_strided_slice %0 {offsets = [0, 0], sizes = [8, 1], strides = [1, 1]} : vector<32x1xf32> to vector<8x1xf32>
    %7 = vector.broadcast %6 : vector<8x1xf32> to vector<8x256xf32>
    %8 = arith.mulf %5, %7 : vector<8x256xf32>
    %9 = vector.extract_strided_slice %1 {offsets = [0, 0], sizes = [8, 1], strides = [1, 1]} : vector<32x1xf32> to vector<8x1xf32>
    %10 = vector.broadcast %9 : vector<8x1xf32> to vector<8x256xf32>
    %11 = arith.addf %8, %10 : vector<8x256xf32>
    %cst_8 = arith.constant 0.000000e+00 : f32
    %12 = vector.broadcast %cst_8 : f32 to vector<8x256xf32>
    %13 = arith.maximumf %11, %12 : vector<8x256xf32>
    %14 = vector.shape_cast %13 : vector<8x256xf32> to vector<1x8x256xf32>
    %c0_9 = arith.constant 0 : index
    %c0_10 = arith.constant 0 : index
    %c0_11 = arith.constant 0 : index
    %15 = vector.load %arg13[%c0_9, %c0_10, %c0_11] : memref<1x8x256xf32, #tpu.memory_space<vmem>>, vector<1x8x256xf32>
    tpu.vector_store %arg13[%c0_9, %c0_10, %c0_11], %14 {strides = array<i32>} : memref<1x8x256xf32, #tpu.memory_space<vmem>>, vector<1x8x256xf32>,
    %c0_12 = arith.constant 0 : index
    %c0_13 = arith.constant 0 : index
    %16 = vector.load %arg7[%c0_12, %c0_13] : memref<4x72xbf16, #tpu.memory_space<vmem>>, vector<4x72xbf16>
    %c0_14 = arith.constant 0 : index
    %c0_15 = arith.constant 0 : index
    %c0_16 = arith.constant 0 : index
    %17 = vector.load %arg2[%c0_14, %c0_15, %c0_16] : memref<1x72x16xbf16, #tpu.memory_space<vmem>>, vector<1x72x16xbf16>
    %18 = vector.shape_cast %17 : vector<1x72x16xbf16> to vector<72x16xbf16>
    %cst_17 = arith.constant dense<0.000000e+00> : vector<4x16xf32>
    %19 = tpu.matmul %16, %18, %cst_17 {dimension_numbers = #tpu.dot_dimension_numbers<[1], [0], [0], [1], [0, 0, 1, 1], [], []>} : vector<4x72xbf16>, vector<72x16xbf16>, vector<4x16xf32> -> vector<4x16xf32>
    %20 = vector.extract_strided_slice %0 {offsets = [8, 0], sizes = [4, 1], strides = [1, 1]} : vector<32x1xf32> to vector<4x1xf32>
    %21 = vector.broadcast %20 : vector<4x1xf32> to vector<4x16xf32>
    %22 = arith.mulf %19, %21 : vector<4x16xf32>
    %23 = vector.extract_strided_slice %1 {offsets = [8, 0], sizes = [4, 1], strides = [1, 1]} : vector<32x1xf32> to vector<4x1xf32>
    %24 = vector.broadcast %23 : vector<4x1xf32> to vector<4x16xf32>
    %25 = arith.addf %22, %24 : vector<4x16xf32>
    %cst_18 = arith.constant 0.000000e+00 : f32
    %26 = vector.broadcast %cst_18 : f32 to vector<4x16xf32>
    %27 = arith.maximumf %25, %26 : vector<4x16xf32>
    %28 = vector.shape_cast %27 : vector<4x16xf32> to vector<1x4x16xf32>
    %c0_19 = arith.constant 0 : index
    %c0_20 = arith.constant 0 : index
    %c0_21 = arith.constant 0 : index
    %29 = vector.load %arg14[%c0_19, %c0_20, %c0_21] : memref<1x4x16xf32, #tpu.memory_space<vmem>>, vector<1x4x16xf32>
    tpu.vector_store %arg14[%c0_19, %c0_20, %c0_21], %28 {strides = array<i32>} : memref<1x4x16xf32, #tpu.memory_space<vmem>>, vector<1x4x16xf32>,
    %c0_22 = arith.constant 0 : index
    %c0_23 = arith.constant 0 : index
    %30 = vector.load %arg8[%c0_22, %c0_23] : memref<4x72xbf16, #tpu.memory_space<vmem>>, vector<4x72xbf16>
    %c0_24 = arith.constant 0 : index
    %c0_25 = arith.constant 0 : index
    %c0_26 = arith.constant 0 : index
    %31 = vector.load %arg3[%c0_24, %c0_25, %c0_26] : memref<1x72x4xbf16, #tpu.memory_space<vmem>>, vector<1x72x4xbf16>
    %32 = vector.shape_cast %31 : vector<1x72x4xbf16> to vector<72x4xbf16>
    %cst_27 = arith.constant dense<0.000000e+00> : vector<4x4xf32>
    %33 = tpu.matmul %30, %32, %cst_27 {dimension_numbers = #tpu.dot_dimension_numbers<[1], [0], [0], [1], [0, 0, 1, 1], [], []>} : vector<4x72xbf16>, vector<72x4xbf16>, vector<4x4xf32> -> vector<4x4xf32>
    %34 = vector.extract_strided_slice %0 {offsets = [12, 0], sizes = [4, 1], strides = [1, 1]} : vector<32x1xf32> to vector<4x1xf32>
    %35 = vector.broadcast %34 : vector<4x1xf32> to vector<4x4xf32>
    %36 = arith.mulf %33, %35 : vector<4x4xf32>
    %37 = vector.extract_strided_slice %1 {offsets = [12, 0], sizes = [4, 1], strides = [1, 1]} : vector<32x1xf32> to vector<4x1xf32>
    %38 = vector.broadcast %37 : vector<4x1xf32> to vector<4x4xf32>
    %39 = arith.addf %36, %38 : vector<4x4xf32>
    %cst_28 = arith.constant 0.000000e+00 : f32
    %40 = vector.broadcast %cst_28 : f32 to vector<4x4xf32>
    %41 = arith.maximumf %39, %40 : vector<4x4xf32>
    %42 = vector.shape_cast %41 : vector<4x4xf32> to vector<1x4x4xf32>
    %c0_29 = arith.constant 0 : index
    %c0_30 = arith.constant 0 : index
    %c0_31 = arith.constant 0 : index
    %43 = vector.load %arg15[%c0_29, %c0_30, %c0_31] : memref<1x4x4xf32, #tpu.memory_space<vmem>>, vector<1x4x4xf32>
    tpu.vector_store %arg15[%c0_29, %c0_30, %c0_31], %42 {strides = array<i32>} : memref<1x4x4xf32, #tpu.memory_space<vmem>>, vector<1x4x4xf32>,
    %c0_32 = arith.constant 0 : index
    %c0_33 = arith.constant 0 : index
    %44 = vector.load %arg9[%c0_32, %c0_33] : memref<8x24xbf16, #tpu.memory_space<vmem>>, vector<8x24xbf16>
    %c0_34 = arith.constant 0 : index
    %c0_35 = arith.constant 0 : index
    %c0_36 = arith.constant 0 : index
    %45 = vector.load %arg4[%c0_34, %c0_35, %c0_36] : memref<1x24x16xbf16, #tpu.memory_space<vmem>>, vector<1x24x16xbf16>
    %46 = vector.shape_cast %45 : vector<1x24x16xbf16> to vector<24x16xbf16>
    %cst_37 = arith.constant dense<0.000000e+00> : vector<8x16xf32>
    %47 = tpu.matmul %44, %46, %cst_37 {dimension_numbers = #tpu.dot_dimension_numbers<[1], [0], [0], [1], [0, 0, 1, 1], [], []>} : vector<8x24xbf16>, vector<24x16xbf16>, vector<8x16xf32> -> vector<8x16xf32>
    %48 = vector.extract_strided_slice %0 {offsets = [16, 0], sizes = [8, 1], strides = [1, 1]} : vector<32x1xf32> to vector<8x1xf32>
    %49 = vector.broadcast %48 : vector<8x1xf32> to vector<8x16xf32>
    %50 = arith.mulf %47, %49 : vector<8x16xf32>
    %51 = vector.extract_strided_slice %1 {offsets = [16, 0], sizes = [8, 1], strides = [1, 1]} : vector<32x1xf32> to vector<8x1xf32>
    %52 = vector.broadcast %51 : vector<8x1xf32> to vector<8x16xf32>
    %53 = arith.addf %50, %52 : vector<8x16xf32>
    %54 = vector.shape_cast %53 : vector<8x16xf32> to vector<1x8x16xf32>
    %c0_38 = arith.constant 0 : index
    %c0_39 = arith.constant 0 : index
    %c0_40 = arith.constant 0 : index
    %55 = vector.load %arg16[%c0_38, %c0_39, %c0_40] : memref<1x8x16xf32, #tpu.memory_space<vmem>>, vector<1x8x16xf32>
    tpu.vector_store %arg16[%c0_38, %c0_39, %c0_40], %54 {strides = array<i32>} : memref<1x8x16xf32, #tpu.memory_space<vmem>>, vector<1x8x16xf32>,
    %c0_41 = arith.constant 0 : index
    %c0_42 = arith.constant 0 : index
    %56 = vector.load %arg10[%c0_41, %c0_42] : memref<8x24xbf16, #tpu.memory_space<vmem>>, vector<8x24xbf16>
    %c0_43 = arith.constant 0 : index
    %c0_44 = arith.constant 0 : index
    %c0_45 = arith.constant 0 : index
    %57 = vector.load %arg5[%c0_43, %c0_44, %c0_45] : memref<1x24x16xbf16, #tpu.memory_space<vmem>>, vector<1x24x16xbf16>
    %58 = vector.shape_cast %57 : vector<1x24x16xbf16> to vector<24x16xbf16>
    %cst_46 = arith.constant dense<0.000000e+00> : vector<8x16xf32>
    %59 = tpu.matmul %56, %58, %cst_46 {dimension_numbers = #tpu.dot_dimension_numbers<[1], [0], [0], [1], [0, 0, 1, 1], [], []>} : vector<8x24xbf16>, vector<24x16xbf16>, vector<8x16xf32> -> vector<8x16xf32>
    %60 = vector.extract_strided_slice %0 {offsets = [24, 0], sizes = [8, 1], strides = [1, 1]} : vector<32x1xf32> to vector<8x1xf32>
    %61 = vector.broadcast %60 : vector<8x1xf32> to vector<8x16xf32>
    %62 = arith.mulf %59, %61 : vector<8x16xf32>
    %63 = vector.extract_strided_slice %1 {offsets = [24, 0], sizes = [8, 1], strides = [1, 1]} : vector<32x1xf32> to vector<8x1xf32>
    %64 = vector.broadcast %63 : vector<8x1xf32> to vector<8x16xf32>
    %65 = arith.addf %62, %64 : vector<8x16xf32>
    %66 = vector.shape_cast %65 : vector<8x16xf32> to vector<1x8x16xf32>
    %c0_47 = arith.constant 0 : index
    %c0_48 = arith.constant 0 : index
    %c0_49 = arith.constant 0 : index
    %67 = vector.load %arg17[%c0_47, %c0_48, %c0_49] : memref<1x8x16xf32, #tpu.memory_space<vmem>>, vector<1x8x16xf32>
    tpu.vector_store %arg17[%c0_47, %c0_48, %c0_49], %66 {strides = array<i32>} : memref<1x8x16xf32, #tpu.memory_space<vmem>>, vector<1x8x16xf32>,
    return
  }
  func.func @transform_0(%arg0: i32) -> (i32, i32, i32) {
    %c0_i32 = arith.constant 0 : i32
    %c0_i32_0 = arith.constant 0 : i32
    %c0_i32_1 = arith.constant 0 : i32
    return %arg0, %c0_i32, %c0_i32_0 : i32, i32, i32
  }
  func.func @transform_1(%arg0: i32) -> (i32, i32, i32) {
    %c0_i32 = arith.constant 0 : i32
    %c0_i32_0 = arith.constant 0 : i32
    %c0_i32_1 = arith.constant 0 : i32
    return %arg0, %c0_i32, %c0_i32_0 : i32, i32, i32
  }
  func.func @transform_2(%arg0: i32) -> (i32, i32, i32) {
    %c0_i32 = arith.constant 0 : i32
    %c0_i32_0 = arith.constant 0 : i32
    %c0_i32_1 = arith.constant 0 : i32
    return %arg0, %c0_i32, %c0_i32_0 : i32, i32, i32
  }
  func.func @transform_3(%arg0: i32) -> (i32, i32, i32) {
    %c0_i32 = arith.constant 0 : i32
    %c0_i32_0 = arith.constant 0 : i32
    %c0_i32_1 = arith.constant 0 : i32
    return %arg0, %c0_i32, %c0_i32_0 : i32, i32, i32
  }
  func.func @transform_4(%arg0: i32) -> (i32, i32, i32) {
    %c0_i32 = arith.constant 0 : i32
    %c0_i32_0 = arith.constant 0 : i32
    %c0_i32_1 = arith.constant 0 : i32
    return %arg0, %c0_i32, %c0_i32_0 : i32, i32, i32
  }
  func.func @transform_5(%arg0: i32) -> (i32, i32) {
    %c0_i32 = arith.constant 0 : i32
    %c0_i32_0 = arith.constant 0 : i32
    %c0_i32_1 = arith.constant 0 : i32
    return %c0_i32, %c0_i32_0 : i32, i32
  }
  func.func @transform_6(%arg0: i32) -> (i32, i32) {
    %c0_i32 = arith.constant 0 : i32
    %c0_i32_0 = arith.constant 0 : i32
    %c0_i32_1 = arith.constant 0 : i32
    return %c0_i32, %c0_i32_0 : i32, i32
  }
  func.func @transform_7(%arg0: i32) -> (i32, i32) {
    %c0_i32 = arith.constant 0 : i32
    %c0_i32_0 = arith.constant 0 : i32
    %c0_i32_1 = arith.constant 0 : i32
    return %c0_i32, %c0_i32_0 : i32, i32
  }
  func.func @transform_8(%arg0: i32) -> (i32, i32) {
    %c0_i32 = arith.constant 0 : i32
    %c0_i32_0 = arith.constant 0 : i32
    %c0_i32_1 = arith.constant 0 : i32
    return %c0_i32, %c0_i32_0 : i32, i32
  }
  func.func @transform_9(%arg0: i32) -> (i32, i32) {
    %c0_i32 = arith.constant 0 : i32
    %c0_i32_0 = arith.constant 0 : i32
    %c0_i32_1 = arith.constant 0 : i32
    return %c0_i32, %c0_i32_0 : i32, i32
  }
  func.func @transform_10(%arg0: i32) -> (i32, i32) {
    %c0_i32 = arith.constant 0 : i32
    %c0_i32_0 = arith.constant 0 : i32
    %c0_i32_1 = arith.constant 0 : i32
    return %c0_i32, %c0_i32_0 : i32, i32
  }
  func.func @transform_11(%arg0: i32) -> (i32, i32) {
    %c0_i32 = arith.constant 0 : i32
    %c0_i32_0 = arith.constant 0 : i32
    %c0_i32_1 = arith.constant 0 : i32
    return %c0_i32, %c0_i32_0 : i32, i32
  }
  func.func @transform_12(%arg0: i32) -> (i32, i32, i32) {
    %c0_i32 = arith.constant 0 : i32
    %c0_i32_0 = arith.constant 0 : i32
    %c0_i32_1 = arith.constant 0 : i32
    return %arg0, %c0_i32, %c0_i32_0 : i32, i32, i32
  }
  func.func @transform_13(%arg0: i32) -> (i32, i32, i32) {
    %c0_i32 = arith.constant 0 : i32
    %c0_i32_0 = arith.constant 0 : i32
    %c0_i32_1 = arith.constant 0 : i32
    return %arg0, %c0_i32, %c0_i32_0 : i32, i32, i32
  }
  func.func @transform_14(%arg0: i32) -> (i32, i32, i32) {
    %c0_i32 = arith.constant 0 : i32
    %c0_i32_0 = arith.constant 0 : i32
    %c0_i32_1 = arith.constant 0 : i32
    return %arg0, %c0_i32, %c0_i32_0 : i32, i32, i32
  }
  func.func @transform_15(%arg0: i32) -> (i32, i32, i32) {
    %c0_i32 = arith.constant 0 : i32
    %c0_i32_0 = arith.constant 0 : i32
    %c0_i32_1 = arith.constant 0 : i32
    return %arg0, %c0_i32, %c0_i32_0 : i32, i32, i32
  }
  func.func @transform_16(%arg0: i32) -> (i32, i32, i32) {
    %c0_i32 = arith.constant 0 : i32
    %c0_i32_0 = arith.constant 0 : i32
    %c0_i32_1 = arith.constant 0 : i32
    return %arg0, %c0_i32, %c0_i32_0 : i32, i32, i32
  }
}

module attributes {stable_mosaic.version = 11 : i64} {
  func.func @_tail_kernel(%arg0: i32, %arg1: memref<1x144x256xbf16, #tpu.memory_space<vmem>>, %arg2: memref<1x72x256xbf16, #tpu.memory_space<vmem>>, %arg3: memref<1x8x256xf32, #tpu.memory_space<vmem>>, %arg4: memref<8x144xbf16, #tpu.memory_space<vmem>>, %arg5: memref<8x72xbf16, #tpu.memory_space<vmem>>, %arg6: memref<8x8xbf16, #tpu.memory_space<vmem>>, %arg7: memref<8x8xbf16, #tpu.memory_space<vmem>>, %arg8: memref<24x1xf32, #tpu.memory_space<vmem>>, %arg9: memref<24x1xf32, #tpu.memory_space<vmem>>, %arg10: memref<1x8x256xf32, #tpu.memory_space<vmem>>) attributes {dimension_semantics = [#tpu.dimension_semantics<parallel>], iteration_bounds = array<i64: 2>, scalar_prefetch = 0 : i64, scratch_operands = 0 : i64, tpu.core_type = #tpu.core_type<tc>, window_params = [{transform_indices = @transform_0, window_bounds = array<i64: 1, 144, 256>}, {transform_indices = @transform_1, window_bounds = array<i64: 1, 72, 256>}, {transform_indices = @transform_2, window_bounds = array<i64: 1, 8, 256>}, {pipeline_mode = #tpu.pipeline_mode<synchronous>, transform_indices = @transform_3, window_bounds = array<i64: 8, 144>}, {pipeline_mode = #tpu.pipeline_mode<synchronous>, transform_indices = @transform_4, window_bounds = array<i64: 8, 72>}, {pipeline_mode = #tpu.pipeline_mode<synchronous>, transform_indices = @transform_5, window_bounds = array<i64: 8, 8>}, {pipeline_mode = #tpu.pipeline_mode<synchronous>, transform_indices = @transform_6, window_bounds = array<i64: 8, 8>}, {pipeline_mode = #tpu.pipeline_mode<synchronous>, transform_indices = @transform_7, window_bounds = array<i64: 24, 1>}, {pipeline_mode = #tpu.pipeline_mode<synchronous>, transform_indices = @transform_8, window_bounds = array<i64: 24, 1>}, {transform_indices = @transform_9, window_bounds = array<i64: 1, 8, 256>}]} {
    %c0 = arith.constant 0 : index
    %c0_0 = arith.constant 0 : index
    %0 = vector.load %arg8[%c0, %c0_0] : memref<24x1xf32, #tpu.memory_space<vmem>>, vector<24x1xf32>
    %c0_1 = arith.constant 0 : index
    %c0_2 = arith.constant 0 : index
    %1 = vector.load %arg9[%c0_1, %c0_2] : memref<24x1xf32, #tpu.memory_space<vmem>>, vector<24x1xf32>
    %c0_3 = arith.constant 0 : index
    %c0_4 = arith.constant 0 : index
    %2 = vector.load %arg4[%c0_3, %c0_4] : memref<8x144xbf16, #tpu.memory_space<vmem>>, vector<8x144xbf16>
    %c0_5 = arith.constant 0 : index
    %c0_6 = arith.constant 0 : index
    %c0_7 = arith.constant 0 : index
    %3 = vector.load %arg1[%c0_5, %c0_6, %c0_7] : memref<1x144x256xbf16, #tpu.memory_space<vmem>>, vector<1x144x256xbf16>
    %4 = vector.shape_cast %3 : vector<1x144x256xbf16> to vector<144x256xbf16>
    %cst = arith.constant dense<0.000000e+00> : vector<8x256xf32>
    %5 = tpu.matmul %2, %4, %cst {dimension_numbers = #tpu.dot_dimension_numbers<[1], [0], [0], [1], [0, 0, 1, 1], [], []>} : vector<8x144xbf16>, vector<144x256xbf16>, vector<8x256xf32> -> vector<8x256xf32>
    %6 = vector.extract_strided_slice %0 {offsets = [0, 0], sizes = [8, 1], strides = [1, 1]} : vector<24x1xf32> to vector<8x1xf32>
    %7 = vector.broadcast %6 : vector<8x1xf32> to vector<8x256xf32>
    %8 = arith.mulf %5, %7 : vector<8x256xf32>
    %9 = vector.extract_strided_slice %1 {offsets = [0, 0], sizes = [8, 1], strides = [1, 1]} : vector<24x1xf32> to vector<8x1xf32>
    %10 = vector.broadcast %9 : vector<8x1xf32> to vector<8x256xf32>
    %11 = arith.addf %8, %10 : vector<8x256xf32>
    %cst_8 = arith.constant 0.000000e+00 : f32
    %12 = vector.broadcast %cst_8 : f32 to vector<8x256xf32>
    %13 = arith.maximumf %11, %12 : vector<8x256xf32>
    %c0_9 = arith.constant 0 : index
    %c0_10 = arith.constant 0 : index
    %14 = vector.load %arg5[%c0_9, %c0_10] : memref<8x72xbf16, #tpu.memory_space<vmem>>, vector<8x72xbf16>
    %c0_11 = arith.constant 0 : index
    %c0_12 = arith.constant 0 : index
    %c0_13 = arith.constant 0 : index
    %15 = vector.load %arg2[%c0_11, %c0_12, %c0_13] : memref<1x72x256xbf16, #tpu.memory_space<vmem>>, vector<1x72x256xbf16>
    %16 = vector.shape_cast %15 : vector<1x72x256xbf16> to vector<72x256xbf16>
    %cst_14 = arith.constant dense<0.000000e+00> : vector<8x256xf32>
    %17 = tpu.matmul %14, %16, %cst_14 {dimension_numbers = #tpu.dot_dimension_numbers<[1], [0], [0], [1], [0, 0, 1, 1], [], []>} : vector<8x72xbf16>, vector<72x256xbf16>, vector<8x256xf32> -> vector<8x256xf32>
    %18 = vector.extract_strided_slice %0 {offsets = [8, 0], sizes = [8, 1], strides = [1, 1]} : vector<24x1xf32> to vector<8x1xf32>
    %19 = vector.broadcast %18 : vector<8x1xf32> to vector<8x256xf32>
    %20 = arith.mulf %17, %19 : vector<8x256xf32>
    %21 = vector.extract_strided_slice %1 {offsets = [8, 0], sizes = [8, 1], strides = [1, 1]} : vector<24x1xf32> to vector<8x1xf32>
    %22 = vector.broadcast %21 : vector<8x1xf32> to vector<8x256xf32>
    %23 = arith.addf %20, %22 : vector<8x256xf32>
    %cst_15 = arith.constant 0.000000e+00 : f32
    %24 = vector.broadcast %cst_15 : f32 to vector<8x256xf32>
    %25 = arith.maximumf %23, %24 : vector<8x256xf32>
    %c0_16 = arith.constant 0 : index
    %c0_17 = arith.constant 0 : index
    %c0_18 = arith.constant 0 : index
    %26 = vector.load %arg3[%c0_16, %c0_17, %c0_18] : memref<1x8x256xf32, #tpu.memory_space<vmem>>, vector<1x8x256xf32>
    %27 = vector.shape_cast %26 : vector<1x8x256xf32> to vector<8x256xf32>
    %28 = arith.mulf %27, %25 : vector<8x256xf32>
    %c0_19 = arith.constant 0 : index
    %c0_20 = arith.constant 0 : index
    %29 = vector.load %arg6[%c0_19, %c0_20] : memref<8x8xbf16, #tpu.memory_space<vmem>>, vector<8x8xbf16>
    %c0_21 = arith.constant 0 : index
    %c0_22 = arith.constant 0 : index
    %30 = vector.load %arg7[%c0_21, %c0_22] : memref<8x8xbf16, #tpu.memory_space<vmem>>, vector<8x8xbf16>
    %31 = arith.truncf %13 : vector<8x256xf32> to vector<8x256xbf16>
    %cst_23 = arith.constant dense<0.000000e+00> : vector<8x256xf32>
    %32 = tpu.matmul %29, %31, %cst_23 {dimension_numbers = #tpu.dot_dimension_numbers<[1], [0], [0], [1], [0, 0, 1, 1], [], []>} : vector<8x8xbf16>, vector<8x256xbf16>, vector<8x256xf32> -> vector<8x256xf32>
    %33 = arith.truncf %28 : vector<8x256xf32> to vector<8x256xbf16>
    %cst_24 = arith.constant dense<0.000000e+00> : vector<8x256xf32>
    %34 = tpu.matmul %30, %33, %cst_24 {dimension_numbers = #tpu.dot_dimension_numbers<[1], [0], [0], [1], [0, 0, 1, 1], [], []>} : vector<8x8xbf16>, vector<8x256xbf16>, vector<8x256xf32> -> vector<8x256xf32>
    %35 = arith.addf %32, %34 : vector<8x256xf32>
    %36 = vector.extract_strided_slice %0 {offsets = [16, 0], sizes = [8, 1], strides = [1, 1]} : vector<24x1xf32> to vector<8x1xf32>
    %37 = vector.broadcast %36 : vector<8x1xf32> to vector<8x256xf32>
    %38 = arith.mulf %35, %37 : vector<8x256xf32>
    %39 = vector.extract_strided_slice %1 {offsets = [16, 0], sizes = [8, 1], strides = [1, 1]} : vector<24x1xf32> to vector<8x1xf32>
    %40 = vector.broadcast %39 : vector<8x1xf32> to vector<8x256xf32>
    %41 = arith.addf %38, %40 : vector<8x256xf32>
    %42 = arith.addf %27, %41 : vector<8x256xf32>
    %cst_25 = arith.constant 0.000000e+00 : f32
    %43 = vector.broadcast %cst_25 : f32 to vector<8x256xf32>
    %44 = arith.maximumf %42, %43 : vector<8x256xf32>
    %45 = vector.shape_cast %44 : vector<8x256xf32> to vector<1x8x256xf32>
    %c0_26 = arith.constant 0 : index
    %c0_27 = arith.constant 0 : index
    %c0_28 = arith.constant 0 : index
    %46 = vector.load %arg10[%c0_26, %c0_27, %c0_28] : memref<1x8x256xf32, #tpu.memory_space<vmem>>, vector<1x8x256xf32>
    tpu.vector_store %arg10[%c0_26, %c0_27, %c0_28], %45 {strides = array<i32>} : memref<1x8x256xf32, #tpu.memory_space<vmem>>, vector<1x8x256xf32>,
    return
  }
  func.func @transform_0(%arg0: i32) -> (i32, i32, i32) {
    %c0_i32 = arith.constant 0 : i32
    %c0_i32_0 = arith.constant 0 : i32
    %c0_i32_1 = arith.constant 0 : i32
    return %arg0, %c0_i32, %c0_i32_0 : i32, i32, i32
  }
  func.func @transform_1(%arg0: i32) -> (i32, i32, i32) {
    %c0_i32 = arith.constant 0 : i32
    %c0_i32_0 = arith.constant 0 : i32
    %c0_i32_1 = arith.constant 0 : i32
    return %arg0, %c0_i32, %c0_i32_0 : i32, i32, i32
  }
  func.func @transform_2(%arg0: i32) -> (i32, i32, i32) {
    %c0_i32 = arith.constant 0 : i32
    %c0_i32_0 = arith.constant 0 : i32
    %c0_i32_1 = arith.constant 0 : i32
    return %arg0, %c0_i32, %c0_i32_0 : i32, i32, i32
  }
  func.func @transform_3(%arg0: i32) -> (i32, i32) {
    %c0_i32 = arith.constant 0 : i32
    %c0_i32_0 = arith.constant 0 : i32
    %c0_i32_1 = arith.constant 0 : i32
    return %c0_i32, %c0_i32_0 : i32, i32
  }
  func.func @transform_4(%arg0: i32) -> (i32, i32) {
    %c0_i32 = arith.constant 0 : i32
    %c0_i32_0 = arith.constant 0 : i32
    %c0_i32_1 = arith.constant 0 : i32
    return %c0_i32, %c0_i32_0 : i32, i32
  }
  func.func @transform_5(%arg0: i32) -> (i32, i32) {
    %c0_i32 = arith.constant 0 : i32
    %c0_i32_0 = arith.constant 0 : i32
    %c0_i32_1 = arith.constant 0 : i32
    return %c0_i32, %c0_i32_0 : i32, i32
  }
  func.func @transform_6(%arg0: i32) -> (i32, i32) {
    %c0_i32 = arith.constant 0 : i32
    %c0_i32_0 = arith.constant 0 : i32
    %c0_i32_1 = arith.constant 0 : i32
    return %c0_i32, %c0_i32_0 : i32, i32
  }
  func.func @transform_7(%arg0: i32) -> (i32, i32) {
    %c0_i32 = arith.constant 0 : i32
    %c0_i32_0 = arith.constant 0 : i32
    %c0_i32_1 = arith.constant 0 : i32
    return %c0_i32, %c0_i32_0 : i32, i32
  }
  func.func @transform_8(%arg0: i32) -> (i32, i32) {
    %c0_i32 = arith.constant 0 : i32
    %c0_i32_0 = arith.constant 0 : i32
    %c0_i32_1 = arith.constant 0 : i32
    return %c0_i32, %c0_i32_0 : i32, i32
  }
  func.func @transform_9(%arg0: i32) -> (i32, i32, i32) {
    %c0_i32 = arith.constant 0 : i32
    %c0_i32_0 = arith.constant 0 : i32
    %c0_i32_1 = arith.constant 0 : i32
    return %arg0, %c0_i32, %c0_i32_0 : i32, i32, i32
  }
}

</mosaic_0001>

<llo_original>
// kernel: strip_pooling2.3
$region0: #{strip_pooling2.3}
  #allocation0 [shape = 'u32[]', space=smem, size = 0x4, offset = 0x4, fixed_abs, tag = 'smem constant byte address 0x4 - core index']
  #allocation1 [shape = 'u32[144,128]{1,0:T(1,128)}', space=vmem, size = 0x12000, scoped, tag = 'internal scratch']
  %s0 = inlined_call_operand.vmem [shape: bf16[2,8,256], index: 0, kind: input, shape index: {}]
  %s1 = inlined_call_operand.vmem [shape: bf16[16,8], index: 1, kind: input, shape index: {}]
  %s2 = inlined_call_operand.vmem [shape: f32[16,1], index: 2, kind: input, shape index: {}]
  %s3 = inlined_call_operand.vmem [shape: f32[16,1], index: 3, kind: input, shape index: {}]
  %s4 = inlined_call_operand.vmem [shape: f32[2,16,256], index: 4, kind: output, shape index: {}]
  %s5 = sld [smem:[#allocation0]]
  $region49: #{strip_pooling2.3} parent=0
    _
  %s7 = ssub.s32 1, %s5
  %s8 = scalar_select 0, %s7, %s5
  loop: start=0, step=1, limit=4
  $region2: #{strip_pooling2.3} parent=0 // loop_pre_header
    _
  $region3: #{strip_pooling2.3} parent=0 // loop_header
    %s10 = sphi 0, %s14
    %p11 = scmp.ge.s32.totalorder %s10, 4
    %s20 = sphi 0, %s22
    %s23 = sphi 0, %s20
    %s24 = sphi 0, %s23
    %s40 = sphi 0, %s24
    %s44 = sphi 0, %s44
    %s46 = sphi 0, %s44
    %s47 = sphi 0, %s46
    %s61 = sphi 0, %s47
    %s65 = sphi 0, %s65
    %s67 = sphi 0, %s65
    %s68 = sphi 0, %s67
    %s82 = sphi 0, %s68
    %s86 = sphi 0, %s86
    %s88 = sphi 0, %s86
    %s89 = sphi 0, %s88
    %s103 = sphi 0, %s89
    %s109 = sphi 0, %s111
    %s112 = sphi 0, %s109
    %s113 = sphi 0, %s112
    %s129 = sphi 0, %s113
  $region4: #{strip_pooling2.3} parent=0 // loop_header_branch
    %13 = sbr.rel (%p11) target = $region8
  $region5: #{strip_pooling2.3} parent=0 // loop_body
    %s15 = ssub.s32 %s10, 1
    %s16 = ssub.s32 %s10, 2
    %s17 = sadd.s32 %s10, 1
    %s18 = ssub.s32 %s10, %s17
    %p19 = scmp.eq.s32.totalorder %s18, 0
    %s21 = sadd.s32 %s20, 1
    %s22 = scalar_select %p19, %s20, %s21
    %p25 = pneg %p19
    %p26 = scmp.eq.s32.totalorder %s10, 1
    %p27 = por %p25, %p26
    %p28 = scmp.ne.s32.totalorder %s20, %s23
    %p29 = scmp.eq.s32.totalorder %s10, 0
    %p30 = por %p28, %p29
    %p31 = scmp.ne.s32.totalorder %s20, %s23
    %p32 = scmp.eq.s32.totalorder %s15, 1
    %p33 = por %p31, %p32
    %p34 = scmp.ne.s32.totalorder %s23, %s24
    %p35 = scmp.eq.s32.totalorder %s15, 0
    %p36 = por %p34, %p35
    %p37 = scmp.ne.s32.totalorder %s23, %s24
    %p38 = scmp.eq.s32.totalorder %s16, 1
    %p39 = por %p37, %p38
    %p41 = scmp.ne.s32.totalorder %s24, %s40
    %p42 = scmp.eq.s32.totalorder %s16, 0
    %p43 = por %p41, %p42
    %s45 = sadd.s32 %s44, 1
    %p48 = scmp.eq.s32.totalorder %s10, 1
    %p49 = scmp.ne.s32.totalorder %s44, %s46
    %p50 = scmp.eq.s32.totalorder %s10, 0
    %p51 = por %p49, %p50
    %p52 = scmp.ne.s32.totalorder %s44, %s46
    %p53 = scmp.eq.s32.totalorder %s15, 1
    %p54 = por %p52, %p53
    %p55 = scmp.ne.s32.totalorder %s46, %s47
    %p56 = scmp.eq.s32.totalorder %s15, 0
    %p57 = por %p55, %p56
    %p58 = scmp.ne.s32.totalorder %s46, %s47
    %p59 = scmp.eq.s32.totalorder %s16, 1
    %p60 = por %p58, %p59
    %p62 = scmp.ne.s32.totalorder %s47, %s61
    %p63 = scmp.eq.s32.totalorder %s16, 0
    %p64 = por %p62, %p63
    %s66 = sadd.s32 %s65, 1
    %p69 = scmp.eq.s32.totalorder %s10, 1
    %p70 = scmp.ne.s32.totalorder %s65, %s67
    %p71 = scmp.eq.s32.totalorder %s10, 0
    %p72 = por %p70, %p71
    %p73 = scmp.ne.s32.totalorder %s65, %s67
    %p74 = scmp.eq.s32.totalorder %s15, 1
    %p75 = por %p73, %p74
    %p76 = scmp.ne.s32.totalorder %s67, %s68
    %p77 = scmp.eq.s32.totalorder %s15, 0
    %p78 = por %p76, %p77
    %p79 = scmp.ne.s32.totalorder %s67, %s68
    %p80 = scmp.eq.s32.totalorder %s16, 1
    %p81 = por %p79, %p80
    %p83 = scmp.ne.s32.totalorder %s68, %s82
    %p84 = scmp.eq.s32.totalorder %s16, 0
    %p85 = por %p83, %p84
    %s87 = sadd.s32 %s86, 1
    %p90 = scmp.eq.s32.totalorder %s10, 1
    %p91 = scmp.ne.s32.totalorder %s86, %s88
    %p92 = scmp.eq.s32.totalorder %s10, 0
    %p93 = por %p91, %p92
    %p94 = scmp.ne.s32.totalorder %s86, %s88
    %p95 = scmp.eq.s32.totalorder %s15, 1
    %p96 = por %p94, %p95
    %p97 = scmp.ne.s32.totalorder %s88, %s89
    %p98 = scmp.eq.s32.totalorder %s15, 0
    %p99 = por %p97, %p98
    %p100 = scmp.ne.s32.totalorder %s88, %s89
    %p101 = scmp.eq.s32.totalorder %s16, 1
    %p102 = por %p100, %p101
    %p104 = scmp.ne.s32.totalorder %s89, %s103
    %p105 = scmp.eq.s32.totalorder %s16, 0
    %p106 = por %p104, %p105
    %s107 = ssub.s32 %s10, %s17
    %p108 = scmp.eq.s32.totalorder %s107, 0
    %s110 = sadd.s32 %s109, 1
    %s111 = scalar_select %p108, %s109, %s110
    %p114 = pneg %p108
    %p115 = scmp.eq.s32.totalorder %s10, 1
    %p116 = por %p114, %p115
    %p117 = scmp.ne.s32.totalorder %s109, %s112
    %p118 = scmp.eq.s32.totalorder %s10, 0
    %p119 = por %p117, %p118
    %p120 = scmp.ne.s32.totalorder %s109, %s112
    %p121 = scmp.eq.s32.totalorder %s15, 1
    %p122 = por %p120, %p121
    %p123 = scmp.ne.s32.totalorder %s112, %s113
    %p124 = scmp.eq.s32.totalorder %s15, 0
    %p125 = por %p123, %p124
    %p126 = scmp.ne.s32.totalorder %s112, %s113
    %p127 = scmp.eq.s32.totalorder %s16, 1
    %p128 = por %p126, %p127
    %p130 = scmp.ne.s32.totalorder %s113, %s129
    %p131 = scmp.eq.s32.totalorder %s16, 0
    %p132 = por %p130, %p131
    %p133 = scmp.le.s32.totalorder 1, %s10
    %p134 = scmp.lt.s32.totalorder %s10, 3
    %p135 = pnand %p133, %p134
    %p136 = pneg %p135
    // Predicated region
    $region9: #{strip_pooling2.3} parent=5 // pred_check
      _
    $region10: #{strip_pooling2.3} parent=5 // pred_check_branch
      %138 = sbr.rel (%p135) target = $region12
    $region11: #{strip_pooling2.3} parent=5 // pred_region
      %s139 = ssub.s32 %s10, 1
      // Predicated region
      $region13: #{strip_pooling2.3} parent=11 // pred_check
        %p140 = pneg %p57
      $region14: #{strip_pooling2.3} parent=11 // pred_check_branch
        %142 = sbr.rel (%p140) target = $region16
      $region15: #{strip_pooling2.3} parent=11 // pred_region
        _
      $region16: #{strip_pooling2.3} parent=11 // pred_fallthru
        _
      // Predicated region
      $region17: #{strip_pooling2.3} parent=11 // pred_check
        %p143 = pneg %p78
      $region18: #{strip_pooling2.3} parent=11 // pred_check_branch
        %145 = sbr.rel (%p143) target = $region20
      $region19: #{strip_pooling2.3} parent=11 // pred_region
        _
      $region20: #{strip_pooling2.3} parent=11 // pred_fallthru
        _
      // Predicated region
      $region21: #{strip_pooling2.3} parent=11 // pred_check
        %p146 = pneg %p99
      $region22: #{strip_pooling2.3} parent=11 // pred_check_branch
        %148 = sbr.rel (%p146) target = $region24
      $region23: #{strip_pooling2.3} parent=11 // pred_region
        _
      $region24: #{strip_pooling2.3} parent=11 // pred_fallthru
        _
    $region12: #{strip_pooling2.3} parent=5 // pred_fallthru
      _
    %p149 = scmp.lt.s32.totalorder %s10, 2
    // Predicated region
    $region25: #{strip_pooling2.3} parent=5 // pred_check
      %p150 = pneg %p149
    $region26: #{strip_pooling2.3} parent=5 // pred_check_branch
      %152 = sbr.rel (%p150) target = $region28
    $region27: #{strip_pooling2.3} parent=5 // pred_region
      // Predicated region
      $region29: #{strip_pooling2.3} parent=27 // pred_check
        %p153 = pneg %p30
      $region30: #{strip_pooling2.3} parent=27 // pred_check_branch
        %155 = sbr.rel (%p153) target = $region32
      $region31: #{strip_pooling2.3} parent=27 // pred_region
        %p156 = scmp.lt.s32.totalorder %s10, 1
        %s157 = scalar_select %p156, %s10, 1
        %s158 = smul.addr %s157, 2
        %s159 = smul.addr %s158, 4
        %s160 = scalar_lea.vmem %s0, %s159
      $region32: #{strip_pooling2.3} parent=27 // pred_fallthru
        _
    $region28: #{strip_pooling2.3} parent=5 // pred_fallthru
      _
    %p161 = scmp.le.s32.totalorder 1, %s10
    %p162 = scmp.lt.s32.totalorder %s10, 3
    %p163 = pnand %p161, %p162
    %p164 = pneg %p163
    // Predicated region
    $region33: #{strip_pooling2.3} parent=5 // pred_check
      _
    $region34: #{strip_pooling2.3} parent=5 // pred_check_branch
      %166 = sbr.rel (%p163) target = $region36
    $region35: #{strip_pooling2.3} parent=5 // pred_region
      %s167 = ssub.s32 %s10, 1
      %p168 = scmp.lt.s32.totalorder %s15, 1
      %s169 = scalar_select %p168, %s15, 1
      %s170 = smul.addr %s169, 2
      %s171 = smul.addr %s170, 4
      %s172 = scalar_lea.vmem %s0, %s171
      %p173 = pneg %p36
      %p174 = pneg %p33
      %p175 = pneg %p57
      %p176 = pneg %p54
      %p177 = pneg %p78
      %p178 = pneg %p75
      %p179 = pneg %p99
      %p180 = pneg %p96
      %p181 = pneg %p125
      %p182 = pneg %p122
      %p183 = scmp.lt.s32.totalorder %s15, 1
      %s184 = scalar_select %p183, %s15, 1
      %s185 = smul.addr %s184, 4
      %s186 = smul.addr %s185, 8
      %s187 = scalar_lea.vmem %s4, %s186
      %p188 = scmp.lt.s32.totalorder %s15, 1
      %s189 = scalar_select %p188, %s15, 1
      %s190 = smul.addr %s189, 2
      %s191 = smul.addr %s190, 4
      %s192 = scalar_lea.vmem %s0, %s191
      %p193 = scmp.lt.s32.totalorder %s15, 1
      %s194 = scalar_select %p193, %s15, 1
      %s195 = smul.addr %s194, 4
      %s196 = smul.addr %s195, 8
      %s197 = scalar_lea.vmem %s4, %s196
      %v199 = vld [vmem:[%s1] sm:$0xf]
      %v200 = vld [vmem:[%s1 + $0x4] sm:$0xf]
      %v201 = vld [vmem:[%s192] sm:$0xff]
      %v204 = vunpack.c.l.b16 %v199
      %v205 = vunpack.c.l.b16 %v200
      %v206 = vpack.c.b16 %v205, %v204
      %v208 = vunpack.c.l.b16 %v201
      %v209 = vunpack.c.h.b16 %v201
      %v210 = vpack.c.b16 %v208, %v208
      %v211 = vpack.c.b16 %v209, %v209
      %vm212 = vcmask 64512
      %v214 = vsel %vm212, %v206, 0
      %vm216 = vcmask 1043456
      %v218 = vsel %vm216, %v210, 0
      %v221 = vsel %vm216, %v211, 0
      %223 = vmatprep.subr.bf16.mxu0 %v221
      %224 = vmatpush1.bf16.msra.mxu0 %v218
      %225 = vmatprep.subr.bf16.mxu0 0
      %226 = vmatpush1.bf16.msra.mxu0 0
      %227 = vmatprep.subr.bf16.mxu0 0
      %228 = vmatpush1.bf16.msra.mxu0 0
      %229 = vmatprep.subr.bf16.mxu0 0
      %230 = vmatpush1.bf16.msra.mxu0 0
      %231 = vmatprep.subr.bf16.mxu0 0
      %232 = vmatpush1.bf16.msra.mxu0 0
      %233 = vmatprep.subr.bf16.mxu0 0
      %234 = vmatpush1.bf16.msra.mxu0 0
      %235 = vmatprep.subr.bf16.mxu0 0
      %236 = vmatpush1.bf16.msra.mxu0 0
      %237 = vmatprep.subr.bf16.mxu0 0
      %238 = vmatpush1.bf16.msra.mxu0 0
      %239 = vmatprep.subr.bf16.mxu0 0
      %240 = vmatpush1.bf16.msra.mxu0 0
      %241 = vmatprep.subr.bf16.mxu0 0
      %242 = vmatpush1.bf16.msra.mxu0 0
      %243 = vmatprep.subr.bf16.mxu0 0
      %244 = vmatpush1.bf16.msra.mxu0 0
      %245 = vmatprep.subr.bf16.mxu0 0
      %246 = vmatpush1.bf16.msra.mxu0 0
      %247 = vmatprep.subr.bf16.mxu0 0
      %248 = vmatpush1.bf16.msra.mxu0 0
      %249 = vmatprep.subr.bf16.mxu0 0
      %250 = vmatpush1.bf16.msra.mxu0 0
      %251 = vmatprep.subr.bf16.mxu0 0
      %252 = vmatpush1.bf16.msra.mxu0 0
      %253 = vmatprep.subr.bf16.mxu0 0
      %254 = vmatpush1.bf16.msra.mxu0 0
      %255 = vmatprep.mubr.bf16.mxu0 0
      %256 = vmatmul.mubr.bf16.gmra.mrb[0].mxu0 %v214
      %v257 = vpop.f32.mrb[0].mxu0
      %v258 = vadd.f32 0.0, %v257
      %v259 = vpop.f32.mrb[0].mxu0
      %v260 = vadd.f32 0.0, %v259
      %v261 = vpop.f32.mrb[0].mxu0
      %v262 = vadd.f32 0.0, %v261
      %v263 = vpop.f32.mrb[0].mxu0
      %v264 = vadd.f32 0.0, %v263
      %265 = vdwg.mxu0
      %v266 = vld [vmem:[%s2] sm:$0xff]
      %v267 = vld [vmem:[%s2 + $0x8] sm:$0xff]
      %269 = vset.pattern.permute.xlu0 0
      %270 = vperm.xlu0 %269, %v266
      %v271 = vpop.permute.xlu0 %270
      %274 = vset.pattern.permute.xlu0 0
      %275 = vperm.xlu0 %274, %v267
      %v276 = vpop.permute.xlu0 %275
      %v278 = vmul.f32 %v258, %v271
      %v279 = vmul.f32 %v260, %v271
      %v280 = vmul.f32 %v262, %v276
      %v281 = vmul.f32 %v264, %v276
      %v282 = vld [vmem:[%s3] sm:$0xff]
      %v283 = vld [vmem:[%s3 + $0x8] sm:$0xff]
      %285 = vset.pattern.permute.xlu0 0
      %286 = vperm.xlu0 %285, %v282
      %v287 = vpop.permute.xlu0 %286
      %290 = vset.pattern.permute.xlu0 0
      %291 = vperm.xlu0 %290, %v283
      %v292 = vpop.permute.xlu0 %291
      %v294 = vadd.f32 %v278, %v287
      %v295 = vadd.f32 %v279, %v287
      %v296 = vadd.f32 %v280, %v292
      %v297 = vadd.f32 %v281, %v292
      %v298 = vmax.f32 %v294, 0.0
      %v299 = vmax.f32 %v295, 0.0
      %v300 = vmax.f32 %v296, 0.0
      %v301 = vmax.f32 %v297, 0.0
      %302 = vst [vmem:[%s197] sm:$0xff] %v298
      %303 = vst [vmem:[%s197 + $0x8] sm:$0xff] %v299
      %304 = vst [vmem:[%s197 + $0x10] sm:$0xff] %v300
      %305 = vst [vmem:[%s197 + $0x18] sm:$0xff] %v301
      %p306 = scmp.lt.s32.totalorder %s15, 1
      %s307 = scalar_select %p306, %s15, 1
      %s308 = smul.addr %s307, 4
      %s309 = smul.addr %s308, 8
      %s310 = scalar_lea.vmem %s4, %s309
      // Predicated region
      $region37: #{strip_pooling2.3} parent=35 // pred_check
        %p311 = pneg %p122
      $region38: #{strip_pooling2.3} parent=35 // pred_check_branch
        %313 = sbr.rel (%p311) target = $region40
      $region39: #{strip_pooling2.3} parent=35 // pred_region
        _
      $region40: #{strip_pooling2.3} parent=35 // pred_fallthru
        _
    $region36: #{strip_pooling2.3} parent=5 // pred_fallthru
      _
    %p314 = scmp.le.s32.totalorder 2, %s10
    // Predicated region
    $region41: #{strip_pooling2.3} parent=5 // pred_check
      %p315 = pneg %p314
    $region42: #{strip_pooling2.3} parent=5 // pred_check_branch
      %317 = sbr.rel (%p315) target = $region44
    $region43: #{strip_pooling2.3} parent=5 // pred_region
      %s318 = ssub.s32 %s10, 2
      // Predicated region
      $region45: #{strip_pooling2.3} parent=43 // pred_check
        %p319 = pneg %p128
      $region46: #{strip_pooling2.3} parent=43 // pred_check_branch
        %321 = sbr.rel (%p319) target = $region48
      $region47: #{strip_pooling2.3} parent=43 // pred_region
        %p322 = scmp.lt.s32.totalorder %s16, 1
        %s323 = scalar_select %p322, %s16, 1
        %s324 = smul.addr %s323, 4
        %s325 = smul.addr %s324, 8
        %s326 = scalar_lea.vmem %s4, %s325
      $region48: #{strip_pooling2.3} parent=43 // pred_fallthru
        _
    $region44: #{strip_pooling2.3} parent=5 // pred_fallthru
      _
  $region6: #{strip_pooling2.3} parent=0 // loop_footer
    %s14 = sadd.s32 1, %s10
  $region7: #{strip_pooling2.3} parent=0 // loop_footer_branch
    %9 = sbr.rel target = $region3
  $region8: #{strip_pooling2.3} parent=0 // loop_exit
    _

// kernel: strip_pooling2.4
$region0: #{strip_pooling2.4}
  #allocation0 [shape = 'u32[]', space=smem, size = 0x4, offset = 0x4, fixed_abs, tag = 'smem constant byte address 0x4 - core index']
  #allocation1 [shape = 'u32[144,128]{1,0:T(1,128)}', space=vmem, size = 0x12000, scoped, tag = 'internal scratch']
  %s0 = inlined_call_operand.vmem [shape: bf16[2,72,256], index: 0, kind: input, shape index: {}]
  %s1 = inlined_call_operand.vmem [shape: bf16[2,72,16], index: 1, kind: input, shape index: {}]
  %s2 = inlined_call_operand.vmem [shape: bf16[2,72,4], index: 2, kind: input, shape index: {}]
  %s3 = inlined_call_operand.vmem [shape: bf16[2,24,16], index: 3, kind: input, shape index: {}]
  %s4 = inlined_call_operand.vmem [shape: bf16[2,24,16], index: 4, kind: input, shape index: {}]
  %s5 = inlined_call_operand.vmem [shape: bf16[8,72], index: 5, kind: input, shape index: {}]
  %s6 = inlined_call_operand.vmem [shape: bf16[4,72], index: 6, kind: input, shape index: {}]
  %s7 = inlined_call_operand.vmem [shape: bf16[4,72], index: 7, kind: input, shape index: {}]
  %s8 = inlined_call_operand.vmem [shape: bf16[8,24], index: 8, kind: input, shape index: {}]
  %s9 = inlined_call_operand.vmem [shape: bf16[8,24], index: 9, kind: input, shape index: {}]
  %s10 = inlined_call_operand.vmem [shape: f32[32,1], index: 10, kind: input, shape index: {}]
  %s11 = inlined_call_operand.vmem [shape: f32[32,1], index: 11, kind: input, shape index: {}]
  %s12 = inlined_call_operand.vmem [shape: f32[2,8,256], index: 12, kind: output, shape index: {0}]
  %s13 = inlined_call_operand.vmem [shape: f32[2,4,16], index: 13, kind: output, shape index: {1}]
  %s14 = inlined_call_operand.vmem [shape: f32[2,4,4], index: 14, kind: output, shape index: {2}]
  %s15 = inlined_call_operand.vmem [shape: f32[2,8,16], index: 15, kind: output, shape index: {3}]
  %s16 = inlined_call_operand.vmem [shape: f32[2,8,16], index: 16, kind: output, shape index: {4}]
  %17 = xla_tuple %s12, %s13, %s14, %s15, %s16
  %s18 = sld [smem:[#allocation0]]
  $region113: #{strip_pooling2.4} parent=0
    _
  %s20 = ssub.s32 1, %s18
  %s21 = scalar_select 0, %s20, %s18
  loop: start=0, step=1, limit=4
  $region2: #{strip_pooling2.4} parent=0 // loop_pre_header
    _
  $region3: #{strip_pooling2.4} parent=0 // loop_header
    %s23 = sphi 0, %s27
    %p24 = scmp.ge.s32.totalorder %s23, 4
    %s33 = sphi 0, %s35
    %s36 = sphi 0, %s33
    %s37 = sphi 0, %s36
    %s53 = sphi 0, %s37
    %s59 = sphi 0, %s61
    %s62 = sphi 0, %s59
    %s63 = sphi 0, %s62
    %s79 = sphi 0, %s63
    %s85 = sphi 0, %s87
    %s88 = sphi 0, %s85
    %s89 = sphi 0, %s88
    %s105 = sphi 0, %s89
    %s111 = sphi 0, %s113
    %s114 = sphi 0, %s111
    %s115 = sphi 0, %s114
    %s131 = sphi 0, %s115
    %s137 = sphi 0, %s139
    %s140 = sphi 0, %s137
    %s141 = sphi 0, %s140
    %s157 = sphi 0, %s141
    %s161 = sphi 0, %s161
    %s163 = sphi 0, %s161
    %s164 = sphi 0, %s163
    %s178 = sphi 0, %s164
    %s182 = sphi 0, %s182
    %s184 = sphi 0, %s182
    %s185 = sphi 0, %s184
    %s199 = sphi 0, %s185
    %s203 = sphi 0, %s203
    %s205 = sphi 0, %s203
    %s206 = sphi 0, %s205
    %s220 = sphi 0, %s206
    %s224 = sphi 0, %s224
    %s226 = sphi 0, %s224
    %s227 = sphi 0, %s226
    %s241 = sphi 0, %s227
    %s245 = sphi 0, %s245
    %s247 = sphi 0, %s245
    %s248 = sphi 0, %s247
    %s262 = sphi 0, %s248
    %s266 = sphi 0, %s266
    %s268 = sphi 0, %s266
    %s269 = sphi 0, %s268
    %s283 = sphi 0, %s269
    %s287 = sphi 0, %s287
    %s289 = sphi 0, %s287
    %s290 = sphi 0, %s289
    %s304 = sphi 0, %s290
    %s310 = sphi 0, %s312
    %s313 = sphi 0, %s310
    %s314 = sphi 0, %s313
    %s330 = sphi 0, %s314
    %s336 = sphi 0, %s338
    %s339 = sphi 0, %s336
    %s340 = sphi 0, %s339
    %s356 = sphi 0, %s340
    %s362 = sphi 0, %s364
    %s365 = sphi 0, %s362
    %s366 = sphi 0, %s365
    %s382 = sphi 0, %s366
    %s388 = sphi 0, %s390
    %s391 = sphi 0, %s388
    %s392 = sphi 0, %s391
    %s408 = sphi 0, %s392
    %s414 = sphi 0, %s416
    %s417 = sphi 0, %s414
    %s418 = sphi 0, %s417
    %s434 = sphi 0, %s418
  $region4: #{strip_pooling2.4} parent=0 // loop_header_branch
    %26 = sbr.rel (%p24) target = $region8
  $region5: #{strip_pooling2.4} parent=0 // loop_body
    %s28 = ssub.s32 %s23, 1
    %s29 = ssub.s32 %s23, 2
    %s30 = sadd.s32 %s23, 1
    %s31 = ssub.s32 %s23, %s30
    %p32 = scmp.eq.s32.totalorder %s31, 0
    %s34 = sadd.s32 %s33, 1
    %s35 = scalar_select %p32, %s33, %s34
    %p38 = pneg %p32
    %p39 = scmp.eq.s32.totalorder %s23, 1
    %p40 = por %p38, %p39
    %p41 = scmp.ne.s32.totalorder %s33, %s36
    %p42 = scmp.eq.s32.totalorder %s23, 0
    %p43 = por %p41, %p42
    %p44 = scmp.ne.s32.totalorder %s33, %s36
    %p45 = scmp.eq.s32.totalorder %s28, 1
    %p46 = por %p44, %p45
    %p47 = scmp.ne.s32.totalorder %s36, %s37
    %p48 = scmp.eq.s32.totalorder %s28, 0
    %p49 = por %p47, %p48
    %p50 = scmp.ne.s32.totalorder %s36, %s37
    %p51 = scmp.eq.s32.totalorder %s29, 1
    %p52 = por %p50, %p51
    %p54 = scmp.ne.s32.totalorder %s37, %s53
    %p55 = scmp.eq.s32.totalorder %s29, 0
    %p56 = por %p54, %p55
    %s57 = ssub.s32 %s23, %s30
    %p58 = scmp.eq.s32.totalorder %s57, 0
    %s60 = sadd.s32 %s59, 1
    %s61 = scalar_select %p58, %s59, %s60
    %p64 = pneg %p58
    %p65 = scmp.eq.s32.totalorder %s23, 1
    %p66 = por %p64, %p65
    %p67 = scmp.ne.s32.totalorder %s59, %s62
    %p68 = scmp.eq.s32.totalorder %s23, 0
    %p69 = por %p67, %p68
    %p70 = scmp.ne.s32.totalorder %s59, %s62
    %p71 = scmp.eq.s32.totalorder %s28, 1
    %p72 = por %p70, %p71
    %p73 = scmp.ne.s32.totalorder %s62, %s63
    %p74 = scmp.eq.s32.totalorder %s28, 0
    %p75 = por %p73, %p74
    %p76 = scmp.ne.s32.totalorder %s62, %s63
    %p77 = scmp.eq.s32.totalorder %s29, 1
    %p78 = por %p76, %p77
    %p80 = scmp.ne.s32.totalorder %s63, %s79
    %p81 = scmp.eq.s32.totalorder %s29, 0
    %p82 = por %p80, %p81
    %s83 = ssub.s32 %s23, %s30
    %p84 = scmp.eq.s32.totalorder %s83, 0
    %s86 = sadd.s32 %s85, 1
    %s87 = scalar_select %p84, %s85, %s86
    %p90 = pneg %p84
    %p91 = scmp.eq.s32.totalorder %s23, 1
    %p92 = por %p90, %p91
    %p93 = scmp.ne.s32.totalorder %s85, %s88
    %p94 = scmp.eq.s32.totalorder %s23, 0
    %p95 = por %p93, %p94
    %p96 = scmp.ne.s32.totalorder %s85, %s88
    %p97 = scmp.eq.s32.totalorder %s28, 1
    %p98 = por %p96, %p97
    %p99 = scmp.ne.s32.totalorder %s88, %s89
    %p100 = scmp.eq.s32.totalorder %s28, 0
    %p101 = por %p99, %p100
    %p102 = scmp.ne.s32.totalorder %s88, %s89
    %p103 = scmp.eq.s32.totalorder %s29, 1
    %p104 = por %p102, %p103
    %p106 = scmp.ne.s32.totalorder %s89, %s105
    %p107 = scmp.eq.s32.totalorder %s29, 0
    %p108 = por %p106, %p107
    %s109 = ssub.s32 %s23, %s30
    %p110 = scmp.eq.s32.totalorder %s109, 0
    %s112 = sadd.s32 %s111, 1
    %s113 = scalar_select %p110, %s111, %s112
    %p116 = pneg %p110
    %p117 = scmp.eq.s32.totalorder %s23, 1
    %p118 = por %p116, %p117
    %p119 = scmp.ne.s32.totalorder %s111, %s114
    %p120 = scmp.eq.s32.totalorder %s23, 0
    %p121 = por %p119, %p120
    %p122 = scmp.ne.s32.totalorder %s111, %s114
    %p123 = scmp.eq.s32.totalorder %s28, 1
    %p124 = por %p122, %p123
    %p125 = scmp.ne.s32.totalorder %s114, %s115
    %p126 = scmp.eq.s32.totalorder %s28, 0
    %p127 = por %p125, %p126
    %p128 = scmp.ne.s32.totalorder %s114, %s115
    %p129 = scmp.eq.s32.totalorder %s29, 1
    %p130 = por %p128, %p129
    %p132 = scmp.ne.s32.totalorder %s115, %s131
    %p133 = scmp.eq.s32.totalorder %s29, 0
    %p134 = por %p132, %p133
    %s135 = ssub.s32 %s23, %s30
    %p136 = scmp.eq.s32.totalorder %s135, 0
    %s138 = sadd.s32 %s137, 1
    %s139 = scalar_select %p136, %s137, %s138
    %p142 = pneg %p136
    %p143 = scmp.eq.s32.totalorder %s23, 1
    %p144 = por %p142, %p143
    %p145 = scmp.ne.s32.totalorder %s137, %s140
    %p146 = scmp.eq.s32.totalorder %s23, 0
    %p147 = por %p145, %p146
    %p148 = scmp.ne.s32.totalorder %s137, %s140
    %p149 = scmp.eq.s32.totalorder %s28, 1
    %p150 = por %p148, %p149
    %p151 = scmp.ne.s32.totalorder %s140, %s141
    %p152 = scmp.eq.s32.totalorder %s28, 0
    %p153 = por %p151, %p152
    %p154 = scmp.ne.s32.totalorder %s140, %s141
    %p155 = scmp.eq.s32.totalorder %s29, 1
    %p156 = por %p154, %p155
    %p158 = scmp.ne.s32.totalorder %s141, %s157
    %p159 = scmp.eq.s32.totalorder %s29, 0
    %p160 = por %p158, %p159
    %s162 = sadd.s32 %s161, 1
    %p165 = scmp.eq.s32.totalorder %s23, 1
    %p166 = scmp.ne.s32.totalorder %s161, %s163
    %p167 = scmp.eq.s32.totalorder %s23, 0
    %p168 = por %p166, %p167
    %p169 = scmp.ne.s32.totalorder %s161, %s163
    %p170 = scmp.eq.s32.totalorder %s28, 1
    %p171 = por %p169, %p170
    %p172 = scmp.ne.s32.totalorder %s163, %s164
    %p173 = scmp.eq.s32.totalorder %s28, 0
    %p174 = por %p172, %p173
    %p175 = scmp.ne.s32.totalorder %s163, %s164
    %p176 = scmp.eq.s32.totalorder %s29, 1
    %p177 = por %p175, %p176
    %p179 = scmp.ne.s32.totalorder %s164, %s178
    %p180 = scmp.eq.s32.totalorder %s29, 0
    %p181 = por %p179, %p180
    %s183 = sadd.s32 %s182, 1
    %p186 = scmp.eq.s32.totalorder %s23, 1
    %p187 = scmp.ne.s32.totalorder %s182, %s184
    %p188 = scmp.eq.s32.totalorder %s23, 0
    %p189 = por %p187, %p188
    %p190 = scmp.ne.s32.totalorder %s182, %s184
    %p191 = scmp.eq.s32.totalorder %s28, 1
    %p192 = por %p190, %p191
    %p193 = scmp.ne.s32.totalorder %s184, %s185
    %p194 = scmp.eq.s32.totalorder %s28, 0
    %p195 = por %p193, %p194
    %p196 = scmp.ne.s32.totalorder %s184, %s185
    %p197 = scmp.eq.s32.totalorder %s29, 1
    %p198 = por %p196, %p197
    %p200 = scmp.ne.s32.totalorder %s185, %s199
    %p201 = scmp.eq.s32.totalorder %s29, 0
    %p202 = por %p200, %p201
    %s204 = sadd.s32 %s203, 1
    %p207 = scmp.eq.s32.totalorder %s23, 1
    %p208 = scmp.ne.s32.totalorder %s203, %s205
    %p209 = scmp.eq.s32.totalorder %s23, 0
    %p210 = por %p208, %p209
    %p211 = scmp.ne.s32.totalorder %s203, %s205
    %p212 = scmp.eq.s32.totalorder %s28, 1
    %p213 = por %p211, %p212
    %p214 = scmp.ne.s32.totalorder %s205, %s206
    %p215 = scmp.eq.s32.totalorder %s28, 0
    %p216 = por %p214, %p215
    %p217 = scmp.ne.s32.totalorder %s205, %s206
    %p218 = scmp.eq.s32.totalorder %s29, 1
    %p219 = por %p217, %p218
    %p221 = scmp.ne.s32.totalorder %s206, %s220
    %p222 = scmp.eq.s32.totalorder %s29, 0
    %p223 = por %p221, %p222
    %s225 = sadd.s32 %s224, 1
    %p228 = scmp.eq.s32.totalorder %s23, 1
    %p229 = scmp.ne.s32.totalorder %s224, %s226
    %p230 = scmp.eq.s32.totalorder %s23, 0
    %p231 = por %p229, %p230
    %p232 = scmp.ne.s32.totalorder %s224, %s226
    %p233 = scmp.eq.s32.totalorder %s28, 1
    %p234 = por %p232, %p233
    %p235 = scmp.ne.s32.totalorder %s226, %s227
    %p236 = scmp.eq.s32.totalorder %s28, 0
    %p237 = por %p235, %p236
    %p238 = scmp.ne.s32.totalorder %s226, %s227
    %p239 = scmp.eq.s32.totalorder %s29, 1
    %p240 = por %p238, %p239
    %p242 = scmp.ne.s32.totalorder %s227, %s241
    %p243 = scmp.eq.s32.totalorder %s29, 0
    %p244 = por %p242, %p243
    %s246 = sadd.s32 %s245, 1
    %p249 = scmp.eq.s32.totalorder %s23, 1
    %p250 = scmp.ne.s32.totalorder %s245, %s247
    %p251 = scmp.eq.s32.totalorder %s23, 0
    %p252 = por %p250, %p251
    %p253 = scmp.ne.s32.totalorder %s245, %s247
    %p254 = scmp.eq.s32.totalorder %s28, 1
    %p255 = por %p253, %p254
    %p256 = scmp.ne.s32.totalorder %s247, %s248
    %p257 = scmp.eq.s32.totalorder %s28, 0
    %p258 = por %p256, %p257
    %p259 = scmp.ne.s32.totalorder %s247, %s248
    %p260 = scmp.eq.s32.totalorder %s29, 1
    %p261 = por %p259, %p260
    %p263 = scmp.ne.s32.totalorder %s248, %s262
    %p264 = scmp.eq.s32.totalorder %s29, 0
    %p265 = por %p263, %p264
    %s267 = sadd.s32 %s266, 1
    %p270 = scmp.eq.s32.totalorder %s23, 1
    %p271 = scmp.ne.s32.totalorder %s266, %s268
    %p272 = scmp.eq.s32.totalorder %s23, 0
    %p273 = por %p271, %p272
    %p274 = scmp.ne.s32.totalorder %s266, %s268
    %p275 = scmp.eq.s32.totalorder %s28, 1
    %p276 = por %p274, %p275
    %p277 = scmp.ne.s32.totalorder %s268, %s269
    %p278 = scmp.eq.s32.totalorder %s28, 0
    %p279 = por %p277, %p278
    %p280 = scmp.ne.s32.totalorder %s268, %s269
    %p281 = scmp.eq.s32.totalorder %s29, 1
    %p282 = por %p280, %p281
    %p284 = scmp.ne.s32.totalorder %s269, %s283
    %p285 = scmp.eq.s32.totalorder %s29, 0
    %p286 = por %p284, %p285
    %s288 = sadd.s32 %s287, 1
    %p291 = scmp.eq.s32.totalorder %s23, 1
    %p292 = scmp.ne.s32.totalorder %s287, %s289
    %p293 = scmp.eq.s32.totalorder %s23, 0
    %p294 = por %p292, %p293
    %p295 = scmp.ne.s32.totalorder %s287, %s289
    %p296 = scmp.eq.s32.totalorder %s28, 1
    %p297 = por %p295, %p296
    %p298 = scmp.ne.s32.totalorder %s289, %s290
    %p299 = scmp.eq.s32.totalorder %s28, 0
    %p300 = por %p298, %p299
    %p301 = scmp.ne.s32.totalorder %s289, %s290
    %p302 = scmp.eq.s32.totalorder %s29, 1
    %p303 = por %p301, %p302
    %p305 = scmp.ne.s32.totalorder %s290, %s304
    %p306 = scmp.eq.s32.totalorder %s29, 0
    %p307 = por %p305, %p306
    %s308 = ssub.s32 %s23, %s30
    %p309 = scmp.eq.s32.totalorder %s308, 0
    %s311 = sadd.s32 %s310, 1
    %s312 = scalar_select %p309, %s310, %s311
    %p315 = pneg %p309
    %p316 = scmp.eq.s32.totalorder %s23, 1
    %p317 = por %p315, %p316
    %p318 = scmp.ne.s32.totalorder %s310, %s313
    %p319 = scmp.eq.s32.totalorder %s23, 0
    %p320 = por %p318, %p319
    %p321 = scmp.ne.s32.totalorder %s310, %s313
    %p322 = scmp.eq.s32.totalorder %s28, 1
    %p323 = por %p321, %p322
    %p324 = scmp.ne.s32.totalorder %s313, %s314
    %p325 = scmp.eq.s32.totalorder %s28, 0
    %p326 = por %p324, %p325
    %p327 = scmp.ne.s32.totalorder %s313, %s314
    %p328 = scmp.eq.s32.totalorder %s29, 1
    %p329 = por %p327, %p328
    %p331 = scmp.ne.s32.totalorder %s314, %s330
    %p332 = scmp.eq.s32.totalorder %s29, 0
    %p333 = por %p331, %p332
    %s334 = ssub.s32 %s23, %s30
    %p335 = scmp.eq.s32.totalorder %s334, 0
    %s337 = sadd.s32 %s336, 1
    %s338 = scalar_select %p335, %s336, %s337
    %p341 = pneg %p335
    %p342 = scmp.eq.s32.totalorder %s23, 1
    %p343 = por %p341, %p342
    %p344 = scmp.ne.s32.totalorder %s336, %s339
    %p345 = scmp.eq.s32.totalorder %s23, 0
    %p346 = por %p344, %p345
    %p347 = scmp.ne.s32.totalorder %s336, %s339
    %p348 = scmp.eq.s32.totalorder %s28, 1
    %p349 = por %p347, %p348
    %p350 = scmp.ne.s32.totalorder %s339, %s340
    %p351 = scmp.eq.s32.totalorder %s28, 0
    %p352 = por %p350, %p351
    %p353 = scmp.ne.s32.totalorder %s339, %s340
    %p354 = scmp.eq.s32.totalorder %s29, 1
    %p355 = por %p353, %p354
    %p357 = scmp.ne.s32.totalorder %s340, %s356
    %p358 = scmp.eq.s32.totalorder %s29, 0
    %p359 = por %p357, %p358
    %s360 = ssub.s32 %s23, %s30
    %p361 = scmp.eq.s32.totalorder %s360, 0
    %s363 = sadd.s32 %s362, 1
    %s364 = scalar_select %p361, %s362, %s363
    %p367 = pneg %p361
    %p368 = scmp.eq.s32.totalorder %s23, 1
    %p369 = por %p367, %p368
    %p370 = scmp.ne.s32.totalorder %s362, %s365
    %p371 = scmp.eq.s32.totalorder %s23, 0
    %p372 = por %p370, %p371
    %p373 = scmp.ne.s32.totalorder %s362, %s365
    %p374 = scmp.eq.s32.totalorder %s28, 1
    %p375 = por %p373, %p374
    %p376 = scmp.ne.s32.totalorder %s365, %s366
    %p377 = scmp.eq.s32.totalorder %s28, 0
    %p378 = por %p376, %p377
    %p379 = scmp.ne.s32.totalorder %s365, %s366
    %p380 = scmp.eq.s32.totalorder %s29, 1
    %p381 = por %p379, %p380
    %p383 = scmp.ne.s32.totalorder %s366, %s382
    %p384 = scmp.eq.s32.totalorder %s29, 0
    %p385 = por %p383, %p384
    %s386 = ssub.s32 %s23, %s30
    %p387 = scmp.eq.s32.totalorder %s386, 0
    %s389 = sadd.s32 %s388, 1
    %s390 = scalar_select %p387, %s388, %s389
    %p393 = pneg %p387
    %p394 = scmp.eq.s32.totalorder %s23, 1
    %p395 = por %p393, %p394
    %p396 = scmp.ne.s32.totalorder %s388, %s391
    %p397 = scmp.eq.s32.totalorder %s23, 0
    %p398 = por %p396, %p397
    %p399 = scmp.ne.s32.totalorder %s388, %s391
    %p400 = scmp.eq.s32.totalorder %s28, 1
    %p401 = por %p399, %p400
    %p402 = scmp.ne.s32.totalorder %s391, %s392
    %p403 = scmp.eq.s32.totalorder %s28, 0
    %p404 = por %p402, %p403
    %p405 = scmp.ne.s32.totalorder %s391, %s392
    %p406 = scmp.eq.s32.totalorder %s29, 1
    %p407 = por %p405, %p406
    %p409 = scmp.ne.s32.totalorder %s392, %s408
    %p410 = scmp.eq.s32.totalorder %s29, 0
    %p411 = por %p409, %p410
    %s412 = ssub.s32 %s23, %s30
    %p413 = scmp.eq.s32.totalorder %s412, 0
    %s415 = sadd.s32 %s414, 1
    %s416 = scalar_select %p413, %s414, %s415
    %p419 = pneg %p413
    %p420 = scmp.eq.s32.totalorder %s23, 1
    %p421 = por %p419, %p420
    %p422 = scmp.ne.s32.totalorder %s414, %s417
    %p423 = scmp.eq.s32.totalorder %s23, 0
    %p424 = por %p422, %p423
    %p425 = scmp.ne.s32.totalorder %s414, %s417
    %p426 = scmp.eq.s32.totalorder %s28, 1
    %p427 = por %p425, %p426
    %p428 = scmp.ne.s32.totalorder %s417, %s418
    %p429 = scmp.eq.s32.totalorder %s28, 0
    %p430 = por %p428, %p429
    %p431 = scmp.ne.s32.totalorder %s417, %s418
    %p432 = scmp.eq.s32.totalorder %s29, 1
    %p433 = por %p431, %p432
    %p435 = scmp.ne.s32.totalorder %s418, %s434
    %p436 = scmp.eq.s32.totalorder %s29, 0
    %p437 = por %p435, %p436
    %p438 = scmp.le.s32.totalorder 1, %s23
    %p439 = scmp.lt.s32.totalorder %s23, 3
    %p440 = pnand %p438, %p439
    %p441 = pneg %p440
    // Predicated region
    $region9: #{strip_pooling2.4} parent=5 // pred_check
      _
    $region10: #{strip_pooling2.4} parent=5 // pred_check_branch
      %443 = sbr.rel (%p440) target = $region12
    $region11: #{strip_pooling2.4} parent=5 // pred_region
      %s444 = ssub.s32 %s23, 1
      // Predicated region
      $region13: #{strip_pooling2.4} parent=11 // pred_check
        %p445 = pneg %p174
      $region14: #{strip_pooling2.4} parent=11 // pred_check_branch
        %447 = sbr.rel (%p445) target = $region16
      $region15: #{strip_pooling2.4} parent=11 // pred_region
        _
      $region16: #{strip_pooling2.4} parent=11 // pred_fallthru
        _
      // Predicated region
      $region17: #{strip_pooling2.4} parent=11 // pred_check
        %p448 = pneg %p195
      $region18: #{strip_pooling2.4} parent=11 // pred_check_branch
        %450 = sbr.rel (%p448) target = $region20
      $region19: #{strip_pooling2.4} parent=11 // pred_region
        _
      $region20: #{strip_pooling2.4} parent=11 // pred_fallthru
        _
      // Predicated region
      $region21: #{strip_pooling2.4} parent=11 // pred_check
        %p451 = pneg %p216
      $region22: #{strip_pooling2.4} parent=11 // pred_check_branch
        %453 = sbr.rel (%p451) target = $region24
      $region23: #{strip_pooling2.4} parent=11 // pred_region
        _
      $region24: #{strip_pooling2.4} parent=11 // pred_fallthru
        _
      // Predicated region
      $region25: #{strip_pooling2.4} parent=11 // pred_check
        %p454 = pneg %p237
      $region26: #{strip_pooling2.4} parent=11 // pred_check_branch
        %456 = sbr.rel (%p454) target = $region28
      $region27: #{strip_pooling2.4} parent=11 // pred_region
        _
      $region28: #{strip_pooling2.4} parent=11 // pred_fallthru
        _
      // Predicated region
      $region29: #{strip_pooling2.4} parent=11 // pred_check
        %p457 = pneg %p258
      $region30: #{strip_pooling2.4} parent=11 // pred_check_branch
        %459 = sbr.rel (%p457) target = $region32
      $region31: #{strip_pooling2.4} parent=11 // pred_region
        _
      $region32: #{strip_pooling2.4} parent=11 // pred_fallthru
        _
      // Predicated region
      $region33: #{strip_pooling2.4} parent=11 // pred_check
        %p460 = pneg %p279
      $region34: #{strip_pooling2.4} parent=11 // pred_check_branch
        %462 = sbr.rel (%p460) target = $region36
      $region35: #{strip_pooling2.4} parent=11 // pred_region
        _
      $region36: #{strip_pooling2.4} parent=11 // pred_fallthru
        _
      // Predicated region
      $region37: #{strip_pooling2.4} parent=11 // pred_check
        %p463 = pneg %p300
      $region38: #{strip_pooling2.4} parent=11 // pred_check_branch
        %465 = sbr.rel (%p463) target = $region40
      $region39: #{strip_pooling2.4} parent=11 // pred_region
        _
      $region40: #{strip_pooling2.4} parent=11 // pred_fallthru
        _
    $region12: #{strip_pooling2.4} parent=5 // pred_fallthru
      _
    %p466 = scmp.lt.s32.totalorder %s23, 2
    // Predicated region
    $region41: #{strip_pooling2.4} parent=5 // pred_check
      %p467 = pneg %p466
    $region42: #{strip_pooling2.4} parent=5 // pred_check_branch
      %469 = sbr.rel (%p467) target = $region44
    $region43: #{strip_pooling2.4} parent=5 // pred_region
      // Predicated region
      $region45: #{strip_pooling2.4} parent=43 // pred_check
        %p470 = pneg %p43
      $region46: #{strip_pooling2.4} parent=43 // pred_check_branch
        %472 = sbr.rel (%p470) target = $region48
      $region47: #{strip_pooling2.4} parent=43 // pred_region
        %p473 = scmp.lt.s32.totalorder %s23, 1
        %s474 = scalar_select %p473, %s23, 1
        %s475 = smul.addr %s474, 18
        %s476 = smul.addr %s475, 4
        %s477 = scalar_lea.vmem %s0, %s476
      $region48: #{strip_pooling2.4} parent=43 // pred_fallthru
        _
      // Predicated region
      $region49: #{strip_pooling2.4} parent=43 // pred_check
        %p478 = pneg %p69
      $region50: #{strip_pooling2.4} parent=43 // pred_check_branch
        %480 = sbr.rel (%p478) target = $region52
      $region51: #{strip_pooling2.4} parent=43 // pred_region
        %p481 = scmp.lt.s32.totalorder %s23, 1
        %s482 = scalar_select %p481, %s23, 1
        %s483 = smul.addr %s482, 9
        %s484 = smul.addr %s483, 4
        %s485 = scalar_lea.vmem %s1, %s484
      $region52: #{strip_pooling2.4} parent=43 // pred_fallthru
        _
      // Predicated region
      $region53: #{strip_pooling2.4} parent=43 // pred_check
        %p486 = pneg %p95
      $region54: #{strip_pooling2.4} parent=43 // pred_check_branch
        %488 = sbr.rel (%p486) target = $region56
      $region55: #{strip_pooling2.4} parent=43 // pred_region
        %p489 = scmp.lt.s32.totalorder %s23, 1
        %s490 = scalar_select %p489, %s23, 1
        %s491 = smul.addr %s490, 9
        %s492 = smul.addr %s491, 4
        %s493 = scalar_lea.vmem %s2, %s492
      $region56: #{strip_pooling2.4} parent=43 // pred_fallthru
        _
      // Predicated region
      $region57: #{strip_pooling2.4} parent=43 // pred_check
        %p494 = pneg %p121
      $region58: #{strip_pooling2.4} parent=43 // pred_check_branch
        %496 = sbr.rel (%p494) target = $region60
      $region59: #{strip_pooling2.4} parent=43 // pred_region
        %p497 = scmp.lt.s32.totalorder %s23, 1
        %s498 = scalar_select %p497, %s23, 1
        %s499 = smul.addr %s498, 3
        %s500 = smul.addr %s499, 4
        %s501 = scalar_lea.vmem %s3, %s500
      $region60: #{strip_pooling2.4} parent=43 // pred_fallthru
        _
      // Predicated region
      $region61: #{strip_pooling2.4} parent=43 // pred_check
        %p502 = pneg %p147
      $region62: #{strip_pooling2.4} parent=43 // pred_check_branch
        %504 = sbr.rel (%p502) target = $region64
      $region63: #{strip_pooling2.4} parent=43 // pred_region
        %p505 = scmp.lt.s32.totalorder %s23, 1
        %s506 = scalar_select %p505, %s23, 1
        %s507 = smul.addr %s506, 3
        %s508 = smul.addr %s507, 4
        %s509 = scalar_lea.vmem %s4, %s508
      $region64: #{strip_pooling2.4} parent=43 // pred_fallthru
        _
    $region44: #{strip_pooling2.4} parent=5 // pred_fallthru
      _
    %p510 = scmp.le.s32.totalorder 1, %s23
    %p511 = scmp.lt.s32.totalorder %s23, 3
    %p512 = pnand %p510, %p511
    %p513 = pneg %p512
    // Predicated region
    $region65: #{strip_pooling2.4} parent=5 // pred_check
      _
    $region66: #{strip_pooling2.4} parent=5 // pred_check_branch
      %515 = sbr.rel (%p512) target = $region68
    $region67: #{strip_pooling2.4} parent=5 // pred_region
      %s516 = ssub.s32 %s23, 1
      %p517 = scmp.lt.s32.totalorder %s28, 1
      %s518 = scalar_select %p517, %s28, 1
      %s519 = smul.addr %s518, 18
      %s520 = smul.addr %s519, 4
      %s521 = scalar_lea.vmem %s0, %s520
      %p522 = pneg %p49
      %p523 = pneg %p46
      %p524 = scmp.lt.s32.totalorder %s28, 1
      %s525 = scalar_select %p524, %s28, 1
      %s526 = smul.addr %s525, 9
      %s527 = smul.addr %s526, 4
      %s528 = scalar_lea.vmem %s1, %s527
      %p529 = pneg %p75
      %p530 = pneg %p72
      %p531 = scmp.lt.s32.totalorder %s28, 1
      %s532 = scalar_select %p531, %s28, 1
      %s533 = smul.addr %s532, 9
      %s534 = smul.addr %s533, 4
      %s535 = scalar_lea.vmem %s2, %s534
      %p536 = pneg %p101
      %p537 = pneg %p98
      %p538 = scmp.lt.s32.totalorder %s28, 1
      %s539 = scalar_select %p538, %s28, 1
      %s540 = smul.addr %s539, 3
      %s541 = smul.addr %s540, 4
      %s542 = scalar_lea.vmem %s3, %s541
      %p543 = pneg %p127
      %p544 = pneg %p124
      %p545 = scmp.lt.s32.totalorder %s28, 1
      %s546 = scalar_select %p545, %s28, 1
      %s547 = smul.addr %s546, 3
      %s548 = smul.addr %s547, 4
      %s549 = scalar_lea.vmem %s4, %s548
      %p550 = pneg %p153
      %p551 = pneg %p150
      %p552 = pneg %p174
      %p553 = pneg %p171
      %p554 = pneg %p195
      %p555 = pneg %p192
      %p556 = pneg %p216
      %p557 = pneg %p213
      %p558 = pneg %p237
      %p559 = pneg %p234
      %p560 = pneg %p258
      %p561 = pneg %p255
      %p562 = pneg %p279
      %p563 = pneg %p276
      %p564 = pneg %p300
      %p565 = pneg %p297
      %p566 = pneg %p326
      %p567 = pneg %p323
      %p568 = scmp.lt.s32.totalorder %s28, 1
      %s569 = scalar_select %p568, %s28, 1
      %s570 = smul.addr %s569, 2
      %s571 = smul.addr %s570, 8
      %s572 = scalar_lea.vmem %s12, %s571
      %p573 = pneg %p352
      %p574 = pneg %p349
      %p575 = scmp.lt.s32.totalorder %s28, 1
      %s576 = scalar_select %p575, %s28, 1
      %s577 = smul.addr %s576, 4
      %s578 = scalar_lea.vmem %s13, %s577
      %p579 = pneg %p378
      %p580 = pneg %p375
      %p581 = scmp.lt.s32.totalorder %s28, 1
      %s582 = scalar_select %p581, %s28, 1
      %s583 = smul.addr %s582, 4
      %s584 = scalar_lea.vmem %s14, %s583
      %p585 = pneg %p404
      %p586 = pneg %p401
      %p587 = scmp.lt.s32.totalorder %s28, 1
      %s588 = scalar_select %p587, %s28, 1
      %s589 = smul.addr %s588, 8
      %s590 = scalar_lea.vmem %s15, %s589
      %p591 = pneg %p430
      %p592 = pneg %p427
      %p593 = scmp.lt.s32.totalorder %s28, 1
      %s594 = scalar_select %p593, %s28, 1
      %s595 = smul.addr %s594, 8
      %s596 = scalar_lea.vmem %s16, %s595
      %p597 = scmp.lt.s32.totalorder %s28, 1
      %s598 = scalar_select %p597, %s28, 1
      %s599 = smul.addr %s598, 18
      %s600 = smul.addr %s599, 4
      %s601 = scalar_lea.vmem %s0, %s600
      %p602 = scmp.lt.s32.totalorder %s28, 1
      %s603 = scalar_select %p602, %s28, 1
      %s604 = smul.addr %s603, 9
      %s605 = smul.addr %s604, 4
      %s606 = scalar_lea.vmem %s1, %s605
      %p607 = scmp.lt.s32.totalorder %s28, 1
      %s608 = scalar_select %p607, %s28, 1
      %s609 = smul.addr %s608, 9
      %s610 = smul.addr %s609, 4
      %s611 = scalar_lea.vmem %s2, %s610
      %p612 = scmp.lt.s32.totalorder %s28, 1
      %s613 = scalar_select %p612, %s28, 1
      %s614 = smul.addr %s613, 3
      %s615 = smul.addr %s614, 4
      %s616 = scalar_lea.vmem %s3, %s615
      %p617 = scmp.lt.s32.totalorder %s28, 1
      %s618 = scalar_select %p617, %s28, 1
      %s619 = smul.addr %s618, 3
      %s620 = smul.addr %s619, 4
      %s621 = scalar_lea.vmem %s4, %s620
      %p622 = scmp.lt.s32.totalorder %s28, 1
      %s623 = scalar_select %p622, %s28, 1
      %s624 = smul.addr %s623, 2
      %s625 = smul.addr %s624, 8
      %s626 = scalar_lea.vmem %s12, %s625
      %p627 = scmp.lt.s32.totalorder %s28, 1
      %s628 = scalar_select %p627, %s28, 1
      %s629 = smul.addr %s628, 4
      %s630 = scalar_lea.vmem %s13, %s629
      %p631 = scmp.lt.s32.totalorder %s28, 1
      %s632 = scalar_select %p631, %s28, 1
      %s633 = smul.addr %s632, 4
      %s634 = scalar_lea.vmem %s14, %s633
      %p635 = scmp.lt.s32.totalorder %s28, 1
      %s636 = scalar_select %p635, %s28, 1
      %s637 = smul.addr %s636, 8
      %s638 = scalar_lea.vmem %s15, %s637
      %p639 = scmp.lt.s32.totalorder %s28, 1
      %s640 = scalar_select %p639, %s28, 1
      %s641 = smul.addr %s640, 8
      %s642 = scalar_lea.vmem %s16, %s641
      %v644 = vld [vmem:[%s10] sm:$0xff]
      %v645 = vld [vmem:[%s10 + $0x8] sm:$0xff]
      %v646 = vld [vmem:[%s10 + $0x10] sm:$0xff]
      %v647 = vld [vmem:[%s10 + $0x18] sm:$0xff]
      %v648 = vld [vmem:[%s11] sm:$0xff]
      %v649 = vld [vmem:[%s11 + $0x8] sm:$0xff]
      %v650 = vld [vmem:[%s11 + $0x10] sm:$0xff]
      %v651 = vld [vmem:[%s11 + $0x18] sm:$0xff]
      %v652 = vld [vmem:[%s5] sm:$0xf]
      %v653 = vld [vmem:[%s601] sm:$0xff]
      %v654 = vld [vmem:[%s601 + $0x8] sm:$0xff]
      %v655 = vld [vmem:[%s601 + $0x10] sm:$0xff]
      %v656 = vld [vmem:[%s601 + $0x18] sm:$0xff]
      %v657 = vld [vmem:[%s601 + $0x20] sm:$0xff]
      %v658 = vld [vmem:[%s601 + $0x28] sm:$0xff]
      %v659 = vld [vmem:[%s601 + $0x30] sm:$0xff]
      %v660 = vld [vmem:[%s601 + $0x38] sm:$0xff]
      %v661 = vld [vmem:[%s601 + $0x40] sm:$0xff]
      %v671 = vunpack.c.l.b16 %v653
      %v672 = vunpack.c.h.b16 %v653
      %v673 = vunpack.c.l.b16 %v654
      %v674 = vunpack.c.h.b16 %v654
      %v675 = vunpack.c.l.b16 %v655
      %v676 = vunpack.c.h.b16 %v655
      %v677 = vunpack.c.l.b16 %v656
      %v678 = vunpack.c.h.b16 %v656
      %v679 = vunpack.c.l.b16 %v657
      %v680 = vunpack.c.h.b16 %v657
      %v681 = vunpack.c.l.b16 %v658
      %v682 = vunpack.c.h.b16 %v658
      %v683 = vunpack.c.l.b16 %v659
      %v684 = vunpack.c.h.b16 %v659
      %v685 = vunpack.c.l.b16 %v660
      %v686 = vunpack.c.h.b16 %v660
      %v687 = vunpack.c.l.b16 %v661
      %v688 = vunpack.c.h.b16 %v661
      %v689 = vpack.c.b16 %v673, %v671
      %v690 = vpack.c.b16 %v674, %v672
      %v691 = vpack.c.b16 %v677, %v675
      %v692 = vpack.c.b16 %v678, %v676
      %v693 = vpack.c.b16 %v681, %v679
      %v694 = vpack.c.b16 %v682, %v680
      %v695 = vpack.c.b16 %v685, %v683
      %v696 = vpack.c.b16 %v686, %v684
      %v697 = vpack.c.b16 %v687, %v687
      %v698 = vpack.c.b16 %v688, %v688
      %vm707 = vcmask 588800
      %v709 = vsel %vm707, %v652, 0
      %vm711 = vcmask 1043456
      %v713 = vsel %vm711, %v697, 0
      %v716 = vsel %vm711, %v698, 0
      %718 = vmatprep.subr.bf16.mxu0 %v690
      %719 = vmatpush1.bf16.msra.mxu0 %v689
      %720 = vmatprep.subr.bf16.mxu0 %v692
      %721 = vmatpush1.bf16.msra.mxu0 %v691
      %722 = vmatprep.subr.bf16.mxu0 %v694
      %723 = vmatpush1.bf16.msra.mxu0 %v693
      %724 = vmatprep.subr.bf16.mxu0 %v696
      %725 = vmatpush1.bf16.msra.mxu0 %v695
      %726 = vmatprep.subr.bf16.mxu0 %v716
      %727 = vmatpush1.bf16.msra.mxu0 %v713
      %728 = vmatprep.subr.bf16.mxu0 0
      %729 = vmatpush1.bf16.msra.mxu0 0
      %730 = vmatprep.subr.bf16.mxu0 0
      %731 = vmatpush1.bf16.msra.mxu0 0
      %732 = vmatprep.subr.bf16.mxu0 0
      %733 = vmatpush1.bf16.msra.mxu0 0
      %734 = vmatprep.subr.bf16.mxu0 0
      %735 = vmatpush1.bf16.msra.mxu0 0
      %736 = vmatprep.subr.bf16.mxu0 0
      %737 = vmatpush1.bf16.msra.mxu0 0
      %738 = vmatprep.subr.bf16.mxu0 0
      %739 = vmatpush1.bf16.msra.mxu0 0
      %740 = vmatprep.subr.bf16.mxu0 0
      %741 = vmatpush1.bf16.msra.mxu0 0
      %742 = vmatprep.subr.bf16.mxu0 0
      %743 = vmatpush1.bf16.msra.mxu0 0
      %744 = vmatprep.subr.bf16.mxu0 0
      %745 = vmatpush1.bf16.msra.mxu0 0
      %746 = vmatprep.subr.bf16.mxu0 0
      %747 = vmatpush1.bf16.msra.mxu0 0
      %748 = vmatprep.subr.bf16.mxu0 0
      %749 = vmatpush1.bf16.msra.mxu0 0
      %750 = vmatprep.mubr.bf16.mxu0 0
      %751 = vmatmul.mubr.bf16.gmra.mrb[0].mxu0 %v709
      %v752 = vpop.f32.mrb[0].mxu0
      %v753 = vadd.f32 0.0, %v752
      %v754 = vpop.f32.mrb[0].mxu0
      %v755 = vadd.f32 0.0, %v754
      %v756 = vpop.f32.mrb[0].mxu0
      %v757 = vpop.f32.mrb[0].mxu0
      %758 = vdwg.mxu0
      %760 = vset.pattern.permute.xlu0 0
      %761 = vperm.xlu0 %760, %v644
      %v762 = vpop.permute.xlu0 %761
      %v764 = vmul.f32 %v753, %v762
      %v765 = vmul.f32 %v755, %v762
      %767 = vset.pattern.permute.xlu0 0
      %768 = vperm.xlu0 %767, %v648
      %v769 = vpop.permute.xlu0 %768
      %v771 = vadd.f32 %v764, %v769
      %v772 = vadd.f32 %v765, %v769
      %v773 = vmax.f32 %v771, 0.0
      %v774 = vmax.f32 %v772, 0.0
      %775 = vst [vmem:[%s626] sm:$0xff] %v773
      %776 = vst [vmem:[%s626 + $0x8] sm:$0xff] %v774
      %v777 = vld [vmem:[%s6] sm:$0x3]
      %v778 = vld [vmem:[%s606] sm:$0xf]
      %v779 = vld [vmem:[%s606 + $0x4] sm:$0xf]
      %v780 = vld [vmem:[%s606 + $0x8] sm:$0xf]
      %v781 = vld [vmem:[%s606 + $0xc] sm:$0xf]
      %v782 = vld [vmem:[%s606 + $0x10] sm:$0xf]
      %v783 = vld [vmem:[%s606 + $0x14] sm:$0xf]
      %v784 = vld [vmem:[%s606 + $0x18] sm:$0xf]
      %v785 = vld [vmem:[%s606 + $0x1c] sm:$0xf]
      %v786 = vld [vmem:[%s606 + $0x20] sm:$0xf]
      %v796 = vunpack.c.l.b16 %v778
      %v797 = vunpack.c.l.b16 %v779
      %v798 = vunpack.c.l.b16 %v780
      %v799 = vunpack.c.l.b16 %v781
      %v800 = vunpack.c.l.b16 %v782
      %v801 = vunpack.c.l.b16 %v783
      %v802 = vunpack.c.l.b16 %v784
      %v803 = vunpack.c.l.b16 %v785
      %v804 = vunpack.c.l.b16 %v786
      %v805 = vpack.c.b16 %v797, %v796
      %v806 = vpack.c.b16 %v799, %v798
      %v807 = vpack.c.b16 %v801, %v800
      %v808 = vpack.c.b16 %v803, %v802
      %v809 = vpack.c.b16 %v804, %v804
      %v815 = vsel %vm707, %v777, 0
      %v818 = vsel %vm711, %v809, 0
      %820 = vmatprep.subr.bf16.mxu0 0
      %821 = vmatpush1.bf16.msra.mxu0 %v805
      %822 = vmatprep.subr.bf16.mxu0 0
      %823 = vmatpush1.bf16.msra.mxu0 %v806
      %824 = vmatprep.subr.bf16.mxu0 0
      %825 = vmatpush1.bf16.msra.mxu0 %v807
      %826 = vmatprep.subr.bf16.mxu0 0
      %827 = vmatpush1.bf16.msra.mxu0 %v808
      %828 = vmatprep.subr.bf16.mxu0 0
      %829 = vmatpush1.bf16.msra.mxu0 %v818
      %830 = vmatprep.subr.bf16.mxu0 0
      %831 = vmatpush1.bf16.msra.mxu0 0
      %832 = vmatprep.subr.bf16.mxu0 0
      %833 = vmatpush1.bf16.msra.mxu0 0
      %834 = vmatprep.subr.bf16.mxu0 0
      %835 = vmatpush1.bf16.msra.mxu0 0
      %836 = vmatprep.subr.bf16.mxu0 0
      %837 = vmatpush1.bf16.msra.mxu0 0
      %838 = vmatprep.subr.bf16.mxu0 0
      %839 = vmatpush1.bf16.msra.mxu0 0
      %840 = vmatprep.subr.bf16.mxu0 0
      %841 = vmatpush1.bf16.msra.mxu0 0
      %842 = vmatprep.subr.bf16.mxu0 0
      %843 = vmatpush1.bf16.msra.mxu0 0
      %844 = vmatprep.subr.bf16.mxu0 0
      %845 = vmatpush1.bf16.msra.mxu0 0
      %846 = vmatprep.subr.bf16.mxu0 0
      %847 = vmatpush1.bf16.msra.mxu0 0
      %848 = vmatprep.subr.bf16.mxu0 0
      %849 = vmatpush1.bf16.msra.mxu0 0
      %850 = vmatprep.subr.bf16.mxu0 0
      %851 = vmatpush1.bf16.msra.mxu0 0
      %852 = vmatprep.mubr.bf16.mxu0 0
      %853 = vmatmul.mubr.bf16.gmra.mrb[0].mxu0 %v815
      %v854 = vpop.f32.mrb[0].mxu0
      %v855 = vadd.f32 0.0, %v854
      %v856 = vpop.f32.mrb[0].mxu0
      %v857 = vpop.f32.mrb[0].mxu0
      %v858 = vpop.f32.mrb[0].mxu0
      %859 = vdwg.mxu0
      %861 = vset.pattern.permute.xlu0 0
      %862 = vperm.xlu0 %861, %v645
      %v863 = vpop.permute.xlu0 %862
      %v865 = vmul.f32 %v855, %v863
      %867 = vset.pattern.permute.xlu0 0
      %868 = vperm.xlu0 %867, %v649
      %v869 = vpop.permute.xlu0 %868
      %v871 = vadd.f32 %v865, %v869
      %v872 = vmax.f32 %v871, 0.0
      %vm873 = vcmask 125952
      %874 = vst.msk [vmem:[%s630] sm:$0xf] %vm873, %v872
      %v875 = vld [vmem:[%s7] sm:$0x3]
      %v876 = vld [vmem:[%s611] sm:$0xf]
      %v877 = vld [vmem:[%s611 + $0x4] sm:$0xf]
      %v878 = vld [vmem:[%s611 + $0x8] sm:$0xf]
      %v879 = vld [vmem:[%s611 + $0xc] sm:$0xf]
      %v880 = vld [vmem:[%s611 + $0x10] sm:$0xf]
      %v881 = vld [vmem:[%s611 + $0x14] sm:$0xf]
      %v882 = vld [vmem:[%s611 + $0x18] sm:$0xf]
      %v883 = vld [vmem:[%s611 + $0x1c] sm:$0xf]
      %v884 = vld [vmem:[%s611 + $0x20] sm:$0xf]
      %v894 = vunpack.c.l.b16 %v876
      %v895 = vunpack.c.l.b16 %v877
      %v896 = vunpack.c.l.b16 %v878
      %v897 = vunpack.c.l.b16 %v879
      %v898 = vunpack.c.l.b16 %v880
      %v899 = vunpack.c.l.b16 %v881
      %v900 = vunpack.c.l.b16 %v882
      %v901 = vunpack.c.l.b16 %v883
      %v902 = vunpack.c.l.b16 %v884
      %v903 = vpack.c.b16 %v895, %v894
      %v904 = vpack.c.b16 %v897, %v896
      %v905 = vpack.c.b16 %v899, %v898
      %v906 = vpack.c.b16 %v901, %v900
      %v907 = vpack.c.b16 %v902, %v902
      %v913 = vsel %vm707, %v875, 0
      %v916 = vsel %vm711, %v907, 0
      %918 = vmatprep.subr.bf16.mxu0 0
      %919 = vmatpush1.bf16.msra.mxu0 %v903
      %920 = vmatprep.subr.bf16.mxu0 0
      %921 = vmatpush1.bf16.msra.mxu0 %v904
      %922 = vmatprep.subr.bf16.mxu0 0
      %923 = vmatpush1.bf16.msra.mxu0 %v905
      %924 = vmatprep.subr.bf16.mxu0 0
      %925 = vmatpush1.bf16.msra.mxu0 %v906
      %926 = vmatprep.subr.bf16.mxu0 0
      %927 = vmatpush1.bf16.msra.mxu0 %v916
      %928 = vmatprep.subr.bf16.mxu0 0
      %929 = vmatpush1.bf16.msra.mxu0 0
      %930 = vmatprep.subr.bf16.mxu0 0
      %931 = vmatpush1.bf16.msra.mxu0 0
      %932 = vmatprep.subr.bf16.mxu0 0
      %933 = vmatpush1.bf16.msra.mxu0 0
      %934 = vmatprep.subr.bf16.mxu0 0
      %935 = vmatpush1.bf16.msra.mxu0 0
      %936 = vmatprep.subr.bf16.mxu0 0
      %937 = vmatpush1.bf16.msra.mxu0 0
      %938 = vmatprep.subr.bf16.mxu0 0
      %939 = vmatpush1.bf16.msra.mxu0 0
      %940 = vmatprep.subr.bf16.mxu0 0
      %941 = vmatpush1.bf16.msra.mxu0 0
      %942 = vmatprep.subr.bf16.mxu0 0
      %943 = vmatpush1.bf16.msra.mxu0 0
      %944 = vmatprep.subr.bf16.mxu0 0
      %945 = vmatpush1.bf16.msra.mxu0 0
      %946 = vmatprep.subr.bf16.mxu0 0
      %947 = vmatpush1.bf16.msra.mxu0 0
      %948 = vmatprep.subr.bf16.mxu0 0
      %949 = vmatpush1.bf16.msra.mxu0 0
      %950 = vmatprep.mubr.bf16.mxu0 0
      %951 = vmatmul.mubr.bf16.gmra.mrb[0].mxu0 %v913
      %v952 = vpop.f32.mrb[0].mxu0
      %v953 = vadd.f32 0.0, %v952
      %v954 = vpop.f32.mrb[0].mxu0
      %v955 = vpop.f32.mrb[0].mxu0
      %v956 = vpop.f32.mrb[0].mxu0
      %957 = vdwg.mxu0
      %v958 = vrot.slane %v863, 4
      %v960 = vmul.f32 %v953, %v958
      %v961 = vrot.slane %v869, 4
      %v963 = vadd.f32 %v960, %v961
      %v964 = vmax.f32 %v963, 0.0
      %vm965 = vcmask 27648
      %966 = vst.msk [vmem:[%s634] sm:$0xf] %vm965, %v964
      %v967 = vld [vmem:[%s8] sm:$0xf]
      %v968 = vld [vmem:[%s616] sm:$0xf]
      %v969 = vld [vmem:[%s616 + $0x4] sm:$0xf]
      %v970 = vld [vmem:[%s616 + $0x8] sm:$0xf]
      %v974 = vunpack.c.l.b16 %v968
      %v975 = vunpack.c.l.b16 %v969
      %v976 = vunpack.c.l.b16 %v970
      %v977 = vpack.c.b16 %v975, %v974
      %v978 = vpack.c.b16 %v976, %v976
      %vm980 = vcmask 195584
      %v982 = vsel %vm980, %v967, 0
      %v985 = vsel %vm711, %v978, 0
      %987 = vmatprep.subr.bf16.mxu0 0
      %988 = vmatpush1.bf16.msra.mxu0 %v977
      %989 = vmatprep.subr.bf16.mxu0 0
      %990 = vmatpush1.bf16.msra.mxu0 %v985
      %991 = vmatprep.subr.bf16.mxu0 0
      %992 = vmatpush1.bf16.msra.mxu0 0
      %993 = vmatprep.subr.bf16.mxu0 0
      %994 = vmatpush1.bf16.msra.mxu0 0
      %995 = vmatprep.subr.bf16.mxu0 0
      %996 = vmatpush1.bf16.msra.mxu0 0
      %997 = vmatprep.subr.bf16.mxu0 0
      %998 = vmatpush1.bf16.msra.mxu0 0
      %999 = vmatprep.subr.bf16.mxu0 0
      %1000 = vmatpush1.bf16.msra.mxu0 0
      %1001 = vmatprep.subr.bf16.mxu0 0
      %1002 = vmatpush1.bf16.msra.mxu0 0
      %1003 = vmatprep.subr.bf16.mxu0 0
      %1004 = vmatpush1.bf16.msra.mxu0 0
      %1005 = vmatprep.subr.bf16.mxu0 0
      %1006 = vmatpush1.bf16.msra.mxu0 0
      %1007 = vmatprep.subr.bf16.mxu0 0
      %1008 = vmatpush1.bf16.msra.mxu0 0
      %1009 = vmatprep.subr.bf16.mxu0 0
      %1010 = vmatpush1.bf16.msra.mxu0 0
      %1011 = vmatprep.subr.bf16.mxu0 0
      %1012 = vmatpush1.bf16.msra.mxu0 0
      %1013 = vmatprep.subr.bf16.mxu0 0
      %1014 = vmatpush1.bf16.msra.mxu0 0
      %1015 = vmatprep.subr.bf16.mxu0 0
      %1016 = vmatpush1.bf16.msra.mxu0 0
      %1017 = vmatprep.subr.bf16.mxu0 0
      %1018 = vmatpush1.bf16.msra.mxu0 0
      %1019 = vmatprep.mubr.bf16.mxu0 0
      %1020 = vmatmul.mubr.bf16.gmra.mrb[0].mxu0 %v982
      %v1021 = vpop.f32.mrb[0].mxu0
      %v1022 = vadd.f32 0.0, %v1021
      %v1023 = vpop.f32.mrb[0].mxu0
      %v1024 = vpop.f32.mrb[0].mxu0
      %v1025 = vpop.f32.mrb[0].mxu0
      %1026 = vdwg.mxu0
      %1028 = vset.pattern.permute.xlu0 0
      %1029 = vperm.xlu0 %1028, %v646
      %v1030 = vpop.permute.xlu0 %1029
      %v1032 = vmul.f32 %v1022, %v1030
      %1034 = vset.pattern.permute.xlu0 0
      %1035 = vperm.xlu0 %1034, %v650
      %v1036 = vpop.permute.xlu0 %1035
      %v1038 = vadd.f32 %v1032, %v1036
      %vm1039 = vcmask 130048
      %1040 = vst.msk [vmem:[%s638] sm:$0xff] %vm1039, %v1038
      %v1041 = vld [vmem:[%s9] sm:$0xf]
      %v1042 = vld [vmem:[%s621] sm:$0xf]
      %v1043 = vld [vmem:[%s621 + $0x4] sm:$0xf]
      %v1044 = vld [vmem:[%s621 + $0x8] sm:$0xf]
      %v1048 = vunpack.c.l.b16 %v1042
      %v1049 = vunpack.c.l.b16 %v1043
      %v1050 = vunpack.c.l.b16 %v1044
      %v1051 = vpack.c.b16 %v1049, %v1048
      %v1052 = vpack.c.b16 %v1050, %v1050
      %v1055 = vsel %vm980, %v1041, 0
      %v1058 = vsel %vm711, %v1052, 0
      %1060 = vmatprep.subr.bf16.mxu0 0
      %1061 = vmatpush1.bf16.msra.mxu0 %v1051
      %1062 = vmatprep.subr.bf16.mxu0 0
      %1063 = vmatpush1.bf16.msra.mxu0 %v1058
      %1064 = vmatprep.subr.bf16.mxu0 0
      %1065 = vmatpush1.bf16.msra.mxu0 0
      %1066 = vmatprep.subr.bf16.mxu0 0
      %1067 = vmatpush1.bf16.msra.mxu0 0
      %1068 = vmatprep.subr.bf16.mxu0 0
      %1069 = vmatpush1.bf16.msra.mxu0 0
      %1070 = vmatprep.subr.bf16.mxu0 0
      %1071 = vmatpush1.bf16.msra.mxu0 0
      %1072 = vmatprep.subr.bf16.mxu0 0
      %1073 = vmatpush1.bf16.msra.mxu0 0
      %1074 = vmatprep.subr.bf16.mxu0 0
      %1075 = vmatpush1.bf16.msra.mxu0 0
      %1076 = vmatprep.subr.bf16.mxu0 0
      %1077 = vmatpush1.bf16.msra.mxu0 0
      %1078 = vmatprep.subr.bf16.mxu0 0
      %1079 = vmatpush1.bf16.msra.mxu0 0
      %1080 = vmatprep.subr.bf16.mxu0 0
      %1081 = vmatpush1.bf16.msra.mxu0 0
      %1082 = vmatprep.subr.bf16.mxu0 0
      %1083 = vmatpush1.bf16.msra.mxu0 0
      %1084 = vmatprep.subr.bf16.mxu0 0
      %1085 = vmatpush1.bf16.msra.mxu0 0
      %1086 = vmatprep.subr.bf16.mxu0 0
      %1087 = vmatpush1.bf16.msra.mxu0 0
      %1088 = vmatprep.subr.bf16.mxu0 0
      %1089 = vmatpush1.bf16.msra.mxu0 0
      %1090 = vmatprep.subr.bf16.mxu0 0
      %1091 = vmatpush1.bf16.msra.mxu0 0
      %1092 = vmatprep.mubr.bf16.mxu0 0
      %1093 = vmatmul.mubr.bf16.gmra.mrb[0].mxu0 %v1055
      %v1094 = vpop.f32.mrb[0].mxu0
      %v1095 = vadd.f32 0.0, %v1094
      %v1096 = vpop.f32.mrb[0].mxu0
      %v1097 = vpop.f32.mrb[0].mxu0
      %v1098 = vpop.f32.mrb[0].mxu0
      %1099 = vdwg.mxu0
      %1101 = vset.pattern.permute.xlu0 0
      %1102 = vperm.xlu0 %1101, %v647
      %v1103 = vpop.permute.xlu0 %1102
      %v1105 = vmul.f32 %v1095, %v1103
      %1107 = vset.pattern.permute.xlu0 0
      %1108 = vperm.xlu0 %1107, %v651
      %v1109 = vpop.permute.xlu0 %1108
      %v1111 = vadd.f32 %v1105, %v1109
      %1112 = vst.msk [vmem:[%s642] sm:$0xff] %vm1039, %v1111
      %p1113 = scmp.lt.s32.totalorder %s28, 1
      %s1114 = scalar_select %p1113, %s28, 1
      %s1115 = smul.addr %s1114, 2
      %s1116 = smul.addr %s1115, 8
      %s1117 = scalar_lea.vmem %s12, %s1116
      %p1118 = scmp.lt.s32.totalorder %s28, 1
      %s1119 = scalar_select %p1118, %s28, 1
      %s1120 = smul.addr %s1119, 4
      %s1121 = scalar_lea.vmem %s13, %s1120
      %p1122 = scmp.lt.s32.totalorder %s28, 1
      %s1123 = scalar_select %p1122, %s28, 1
      %s1124 = smul.addr %s1123, 4
      %s1125 = scalar_lea.vmem %s14, %s1124
      %p1126 = scmp.lt.s32.totalorder %s28, 1
      %s1127 = scalar_select %p1126, %s28, 1
      %s1128 = smul.addr %s1127, 8
      %s1129 = scalar_lea.vmem %s15, %s1128
      %p1130 = scmp.lt.s32.totalorder %s28, 1
      %s1131 = scalar_select %p1130, %s28, 1
      %s1132 = smul.addr %s1131, 8
      %s1133 = scalar_lea.vmem %s16, %s1132
      // Predicated region
      $region69: #{strip_pooling2.4} parent=67 // pred_check
        %p1134 = pneg %p323
      $region70: #{strip_pooling2.4} parent=67 // pred_check_branch
        %1136 = sbr.rel (%p1134) target = $region72
      $region71: #{strip_pooling2.4} parent=67 // pred_region
        _
      $region72: #{strip_pooling2.4} parent=67 // pred_fallthru
        _
      // Predicated region
      $region73: #{strip_pooling2.4} parent=67 // pred_check
        %p1137 = pneg %p349
      $region74: #{strip_pooling2.4} parent=67 // pred_check_branch
        %1139 = sbr.rel (%p1137) target = $region76
      $region75: #{strip_pooling2.4} parent=67 // pred_region
        _
      $region76: #{strip_pooling2.4} parent=67 // pred_fallthru
        _
      // Predicated region
      $region77: #{strip_pooling2.4} parent=67 // pred_check
        %p1140 = pneg %p375
      $region78: #{strip_pooling2.4} parent=67 // pred_check_branch
        %1142 = sbr.rel (%p1140) target = $region80
      $region79: #{strip_pooling2.4} parent=67 // pred_region
        _
      $region80: #{strip_pooling2.4} parent=67 // pred_fallthru
        _
      // Predicated region
      $region81: #{strip_pooling2.4} parent=67 // pred_check
        %p1143 = pneg %p401
      $region82: #{strip_pooling2.4} parent=67 // pred_check_branch
        %1145 = sbr.rel (%p1143) target = $region84
      $region83: #{strip_pooling2.4} parent=67 // pred_region
        _
      $region84: #{strip_pooling2.4} parent=67 // pred_fallthru
        _
      // Predicated region
      $region85: #{strip_pooling2.4} parent=67 // pred_check
        %p1146 = pneg %p427
      $region86: #{strip_pooling2.4} parent=67 // pred_check_branch
        %1148 = sbr.rel (%p1146) target = $region88
      $region87: #{strip_pooling2.4} parent=67 // pred_region
        _
      $region88: #{strip_pooling2.4} parent=67 // pred_fallthru
        _
    $region68: #{strip_pooling2.4} parent=5 // pred_fallthru
      _
    %p1149 = scmp.le.s32.totalorder 2, %s23
    // Predicated region
    $region89: #{strip_pooling2.4} parent=5 // pred_check
      %p1150 = pneg %p1149
    $region90: #{strip_pooling2.4} parent=5 // pred_check_branch
      %1152 = sbr.rel (%p1150) target = $region92
    $region91: #{strip_pooling2.4} parent=5 // pred_region
      %s1153 = ssub.s32 %s23, 2
      // Predicated region
      $region93: #{strip_pooling2.4} parent=91 // pred_check
        %p1154 = pneg %p329
      $region94: #{strip_pooling2.4} parent=91 // pred_check_branch
        %1156 = sbr.rel (%p1154) target = $region96
      $region95: #{strip_pooling2.4} parent=91 // pred_region
        %p1157 = scmp.lt.s32.totalorder %s29, 1
        %s1158 = scalar_select %p1157, %s29, 1
        %s1159 = smul.addr %s1158, 2
        %s1160 = smul.addr %s1159, 8
        %s1161 = scalar_lea.vmem %s12, %s1160
      $region96: #{strip_pooling2.4} parent=91 // pred_fallthru
        _
      // Predicated region
      $region97: #{strip_pooling2.4} parent=91 // pred_check
        %p1162 = pneg %p355
      $region98: #{strip_pooling2.4} parent=91 // pred_check_branch
        %1164 = sbr.rel (%p1162) target = $region100
      $region99: #{strip_pooling2.4} parent=91 // pred_region
        %p1165 = scmp.lt.s32.totalorder %s29, 1
        %s1166 = scalar_select %p1165, %s29, 1
        %s1167 = smul.addr %s1166, 4
        %s1168 = scalar_lea.vmem %s13, %s1167
      $region100: #{strip_pooling2.4} parent=91 // pred_fallthru
        _
      // Predicated region
      $region101: #{strip_pooling2.4} parent=91 // pred_check
        %p1169 = pneg %p381
      $region102: #{strip_pooling2.4} parent=91 // pred_check_branch
        %1171 = sbr.rel (%p1169) target = $region104
      $region103: #{strip_pooling2.4} parent=91 // pred_region
        %p1172 = scmp.lt.s32.totalorder %s29, 1
        %s1173 = scalar_select %p1172, %s29, 1
        %s1174 = smul.addr %s1173, 4
        %s1175 = scalar_lea.vmem %s14, %s1174
      $region104: #{strip_pooling2.4} parent=91 // pred_fallthru
        _
      // Predicated region
      $region105: #{strip_pooling2.4} parent=91 // pred_check
        %p1176 = pneg %p407
      $region106: #{strip_pooling2.4} parent=91 // pred_check_branch
        %1178 = sbr.rel (%p1176) target = $region108
      $region107: #{strip_pooling2.4} parent=91 // pred_region
        %p1179 = scmp.lt.s32.totalorder %s29, 1
        %s1180 = scalar_select %p1179, %s29, 1
        %s1181 = smul.addr %s1180, 8
        %s1182 = scalar_lea.vmem %s15, %s1181
      $region108: #{strip_pooling2.4} parent=91 // pred_fallthru
        _
      // Predicated region
      $region109: #{strip_pooling2.4} parent=91 // pred_check
        %p1183 = pneg %p433
      $region110: #{strip_pooling2.4} parent=91 // pred_check_branch
        %1185 = sbr.rel (%p1183) target = $region112
      $region111: #{strip_pooling2.4} parent=91 // pred_region
        %p1186 = scmp.lt.s32.totalorder %s29, 1
        %s1187 = scalar_select %p1186, %s29, 1
        %s1188 = smul.addr %s1187, 8
        %s1189 = scalar_lea.vmem %s16, %s1188
      $region112: #{strip_pooling2.4} parent=91 // pred_fallthru
        _
    $region92: #{strip_pooling2.4} parent=5 // pred_fallthru
      _
  $region6: #{strip_pooling2.4} parent=0 // loop_footer
    %s27 = sadd.s32 1, %s23
  $region7: #{strip_pooling2.4} parent=0 // loop_footer_branch
    %22 = sbr.rel target = $region3
  $region8: #{strip_pooling2.4} parent=0 // loop_exit
    _

// kernel: strip_pooling2.5
$region0: #{strip_pooling2.5}
  #allocation0 [shape = 'u32[]', space=smem, size = 0x4, offset = 0x4, fixed_abs, tag = 'smem constant byte address 0x4 - core index']
  #allocation1 [shape = 'u32[144,128]{1,0:T(1,128)}', space=vmem, size = 0x12000, scoped, tag = 'internal scratch']
  %s0 = inlined_call_operand.vmem [shape: bf16[2,144,256], index: 0, kind: input, shape index: {}]
  %s1 = inlined_call_operand.vmem [shape: bf16[2,72,256], index: 1, kind: input, shape index: {}]
  %s2 = inlined_call_operand.vmem [shape: f32[2,8,256], index: 2, kind: input, shape index: {}]
  %s3 = inlined_call_operand.vmem [shape: bf16[8,144], index: 3, kind: input, shape index: {}]
  %s4 = inlined_call_operand.vmem [shape: bf16[8,72], index: 4, kind: input, shape index: {}]
  %s5 = inlined_call_operand.vmem [shape: bf16[8,8], index: 5, kind: input, shape index: {}]
  %s6 = inlined_call_operand.vmem [shape: bf16[8,8], index: 6, kind: input, shape index: {}]
  %s7 = inlined_call_operand.vmem [shape: f32[24,1], index: 7, kind: input, shape index: {}]
  %s8 = inlined_call_operand.vmem [shape: f32[24,1], index: 8, kind: input, shape index: {}]
  %s9 = inlined_call_operand.vmem [shape: f32[2,8,256], index: 9, kind: output, shape index: {}]
  %s10 = sld [smem:[#allocation0]]
  $region69: #{strip_pooling2.5} parent=0
    _
  %s12 = ssub.s32 1, %s10
  %s13 = scalar_select 0, %s12, %s10
  loop: start=0, step=1, limit=4
  $region2: #{strip_pooling2.5} parent=0 // loop_pre_header
    _
  $region3: #{strip_pooling2.5} parent=0 // loop_header
    %s15 = sphi 0, %s19
    %p16 = scmp.ge.s32.totalorder %s15, 4
    %s25 = sphi 0, %s27
    %s28 = sphi 0, %s25
    %s29 = sphi 0, %s28
    %s45 = sphi 0, %s29
    %s51 = sphi 0, %s53
    %s54 = sphi 0, %s51
    %s55 = sphi 0, %s54
    %s71 = sphi 0, %s55
    %s77 = sphi 0, %s79
    %s80 = sphi 0, %s77
    %s81 = sphi 0, %s80
    %s97 = sphi 0, %s81
    %s101 = sphi 0, %s101
    %s103 = sphi 0, %s101
    %s104 = sphi 0, %s103
    %s118 = sphi 0, %s104
    %s122 = sphi 0, %s122
    %s124 = sphi 0, %s122
    %s125 = sphi 0, %s124
    %s139 = sphi 0, %s125
    %s143 = sphi 0, %s143
    %s145 = sphi 0, %s143
    %s146 = sphi 0, %s145
    %s160 = sphi 0, %s146
    %s164 = sphi 0, %s164
    %s166 = sphi 0, %s164
    %s167 = sphi 0, %s166
    %s181 = sphi 0, %s167
    %s185 = sphi 0, %s185
    %s187 = sphi 0, %s185
    %s188 = sphi 0, %s187
    %s202 = sphi 0, %s188
    %s206 = sphi 0, %s206
    %s208 = sphi 0, %s206
    %s209 = sphi 0, %s208
    %s223 = sphi 0, %s209
    %s229 = sphi 0, %s231
    %s232 = sphi 0, %s229
    %s233 = sphi 0, %s232
    %s249 = sphi 0, %s233
  $region4: #{strip_pooling2.5} parent=0 // loop_header_branch
    %18 = sbr.rel (%p16) target = $region8
  $region5: #{strip_pooling2.5} parent=0 // loop_body
    %s20 = ssub.s32 %s15, 1
    %s21 = ssub.s32 %s15, 2
    %s22 = sadd.s32 %s15, 1
    %s23 = ssub.s32 %s15, %s22
    %p24 = scmp.eq.s32.totalorder %s23, 0
    %s26 = sadd.s32 %s25, 1
    %s27 = scalar_select %p24, %s25, %s26
    %p30 = pneg %p24
    %p31 = scmp.eq.s32.totalorder %s15, 1
    %p32 = por %p30, %p31
    %p33 = scmp.ne.s32.totalorder %s25, %s28
    %p34 = scmp.eq.s32.totalorder %s15, 0
    %p35 = por %p33, %p34
    %p36 = scmp.ne.s32.totalorder %s25, %s28
    %p37 = scmp.eq.s32.totalorder %s20, 1
    %p38 = por %p36, %p37
    %p39 = scmp.ne.s32.totalorder %s28, %s29
    %p40 = scmp.eq.s32.totalorder %s20, 0
    %p41 = por %p39, %p40
    %p42 = scmp.ne.s32.totalorder %s28, %s29
    %p43 = scmp.eq.s32.totalorder %s21, 1
    %p44 = por %p42, %p43
    %p46 = scmp.ne.s32.totalorder %s29, %s45
    %p47 = scmp.eq.s32.totalorder %s21, 0
    %p48 = por %p46, %p47
    %s49 = ssub.s32 %s15, %s22
    %p50 = scmp.eq.s32.totalorder %s49, 0
    %s52 = sadd.s32 %s51, 1
    %s53 = scalar_select %p50, %s51, %s52
    %p56 = pneg %p50
    %p57 = scmp.eq.s32.totalorder %s15, 1
    %p58 = por %p56, %p57
    %p59 = scmp.ne.s32.totalorder %s51, %s54
    %p60 = scmp.eq.s32.totalorder %s15, 0
    %p61 = por %p59, %p60
    %p62 = scmp.ne.s32.totalorder %s51, %s54
    %p63 = scmp.eq.s32.totalorder %s20, 1
    %p64 = por %p62, %p63
    %p65 = scmp.ne.s32.totalorder %s54, %s55
    %p66 = scmp.eq.s32.totalorder %s20, 0
    %p67 = por %p65, %p66
    %p68 = scmp.ne.s32.totalorder %s54, %s55
    %p69 = scmp.eq.s32.totalorder %s21, 1
    %p70 = por %p68, %p69
    %p72 = scmp.ne.s32.totalorder %s55, %s71
    %p73 = scmp.eq.s32.totalorder %s21, 0
    %p74 = por %p72, %p73
    %s75 = ssub.s32 %s15, %s22
    %p76 = scmp.eq.s32.totalorder %s75, 0
    %s78 = sadd.s32 %s77, 1
    %s79 = scalar_select %p76, %s77, %s78
    %p82 = pneg %p76
    %p83 = scmp.eq.s32.totalorder %s15, 1
    %p84 = por %p82, %p83
    %p85 = scmp.ne.s32.totalorder %s77, %s80
    %p86 = scmp.eq.s32.totalorder %s15, 0
    %p87 = por %p85, %p86
    %p88 = scmp.ne.s32.totalorder %s77, %s80
    %p89 = scmp.eq.s32.totalorder %s20, 1
    %p90 = por %p88, %p89
    %p91 = scmp.ne.s32.totalorder %s80, %s81
    %p92 = scmp.eq.s32.totalorder %s20, 0
    %p93 = por %p91, %p92
    %p94 = scmp.ne.s32.totalorder %s80, %s81
    %p95 = scmp.eq.s32.totalorder %s21, 1
    %p96 = por %p94, %p95
    %p98 = scmp.ne.s32.totalorder %s81, %s97
    %p99 = scmp.eq.s32.totalorder %s21, 0
    %p100 = por %p98, %p99
    %s102 = sadd.s32 %s101, 1
    %p105 = scmp.eq.s32.totalorder %s15, 1
    %p106 = scmp.ne.s32.totalorder %s101, %s103
    %p107 = scmp.eq.s32.totalorder %s15, 0
    %p108 = por %p106, %p107
    %p109 = scmp.ne.s32.totalorder %s101, %s103
    %p110 = scmp.eq.s32.totalorder %s20, 1
    %p111 = por %p109, %p110
    %p112 = scmp.ne.s32.totalorder %s103, %s104
    %p113 = scmp.eq.s32.totalorder %s20, 0
    %p114 = por %p112, %p113
    %p115 = scmp.ne.s32.totalorder %s103, %s104
    %p116 = scmp.eq.s32.totalorder %s21, 1
    %p117 = por %p115, %p116
    %p119 = scmp.ne.s32.totalorder %s104, %s118
    %p120 = scmp.eq.s32.totalorder %s21, 0
    %p121 = por %p119, %p120
    %s123 = sadd.s32 %s122, 1
    %p126 = scmp.eq.s32.totalorder %s15, 1
    %p127 = scmp.ne.s32.totalorder %s122, %s124
    %p128 = scmp.eq.s32.totalorder %s15, 0
    %p129 = por %p127, %p128
    %p130 = scmp.ne.s32.totalorder %s122, %s124
    %p131 = scmp.eq.s32.totalorder %s20, 1
    %p132 = por %p130, %p131
    %p133 = scmp.ne.s32.totalorder %s124, %s125
    %p134 = scmp.eq.s32.totalorder %s20, 0
    %p135 = por %p133, %p134
    %p136 = scmp.ne.s32.totalorder %s124, %s125
    %p137 = scmp.eq.s32.totalorder %s21, 1
    %p138 = por %p136, %p137
    %p140 = scmp.ne.s32.totalorder %s125, %s139
    %p141 = scmp.eq.s32.totalorder %s21, 0
    %p142 = por %p140, %p141
    %s144 = sadd.s32 %s143, 1
    %p147 = scmp.eq.s32.totalorder %s15, 1
    %p148 = scmp.ne.s32.totalorder %s143, %s145
    %p149 = scmp.eq.s32.totalorder %s15, 0
    %p150 = por %p148, %p149
    %p151 = scmp.ne.s32.totalorder %s143, %s145
    %p152 = scmp.eq.s32.totalorder %s20, 1
    %p153 = por %p151, %p152
    %p154 = scmp.ne.s32.totalorder %s145, %s146
    %p155 = scmp.eq.s32.totalorder %s20, 0
    %p156 = por %p154, %p155
    %p157 = scmp.ne.s32.totalorder %s145, %s146
    %p158 = scmp.eq.s32.totalorder %s21, 1
    %p159 = por %p157, %p158
    %p161 = scmp.ne.s32.totalorder %s146, %s160
    %p162 = scmp.eq.s32.totalorder %s21, 0
    %p163 = por %p161, %p162
    %s165 = sadd.s32 %s164, 1
    %p168 = scmp.eq.s32.totalorder %s15, 1
    %p169 = scmp.ne.s32.totalorder %s164, %s166
    %p170 = scmp.eq.s32.totalorder %s15, 0
    %p171 = por %p169, %p170
    %p172 = scmp.ne.s32.totalorder %s164, %s166
    %p173 = scmp.eq.s32.totalorder %s20, 1
    %p174 = por %p172, %p173
    %p175 = scmp.ne.s32.totalorder %s166, %s167
    %p176 = scmp.eq.s32.totalorder %s20, 0
    %p177 = por %p175, %p176
    %p178 = scmp.ne.s32.totalorder %s166, %s167
    %p179 = scmp.eq.s32.totalorder %s21, 1
    %p180 = por %p178, %p179
    %p182 = scmp.ne.s32.totalorder %s167, %s181
    %p183 = scmp.eq.s32.totalorder %s21, 0
    %p184 = por %p182, %p183
    %s186 = sadd.s32 %s185, 1
    %p189 = scmp.eq.s32.totalorder %s15, 1
    %p190 = scmp.ne.s32.totalorder %s185, %s187
    %p191 = scmp.eq.s32.totalorder %s15, 0
    %p192 = por %p190, %p191
    %p193 = scmp.ne.s32.totalorder %s185, %s187
    %p194 = scmp.eq.s32.totalorder %s20, 1
    %p195 = por %p193, %p194
    %p196 = scmp.ne.s32.totalorder %s187, %s188
    %p197 = scmp.eq.s32.totalorder %s20, 0
    %p198 = por %p196, %p197
    %p199 = scmp.ne.s32.totalorder %s187, %s188
    %p200 = scmp.eq.s32.totalorder %s21, 1
    %p201 = por %p199, %p200
    %p203 = scmp.ne.s32.totalorder %s188, %s202
    %p204 = scmp.eq.s32.totalorder %s21, 0
    %p205 = por %p203, %p204
    %s207 = sadd.s32 %s206, 1
    %p210 = scmp.eq.s32.totalorder %s15, 1
    %p211 = scmp.ne.s32.totalorder %s206, %s208
    %p212 = scmp.eq.s32.totalorder %s15, 0
    %p213 = por %p211, %p212
    %p214 = scmp.ne.s32.totalorder %s206, %s208
    %p215 = scmp.eq.s32.totalorder %s20, 1
    %p216 = por %p214, %p215
    %p217 = scmp.ne.s32.totalorder %s208, %s209
    %p218 = scmp.eq.s32.totalorder %s20, 0
    %p219 = por %p217, %p218
    %p220 = scmp.ne.s32.totalorder %s208, %s209
    %p221 = scmp.eq.s32.totalorder %s21, 1
    %p222 = por %p220, %p221
    %p224 = scmp.ne.s32.totalorder %s209, %s223
    %p225 = scmp.eq.s32.totalorder %s21, 0
    %p226 = por %p224, %p225
    %s227 = ssub.s32 %s15, %s22
    %p228 = scmp.eq.s32.totalorder %s227, 0
    %s230 = sadd.s32 %s229, 1
    %s231 = scalar_select %p228, %s229, %s230
    %p234 = pneg %p228
    %p235 = scmp.eq.s32.totalorder %s15, 1
    %p236 = por %p234, %p235
    %p237 = scmp.ne.s32.totalorder %s229, %s232
    %p238 = scmp.eq.s32.totalorder %s15, 0
    %p239 = por %p237, %p238
    %p240 = scmp.ne.s32.totalorder %s229, %s232
    %p241 = scmp.eq.s32.totalorder %s20, 1
    %p242 = por %p240, %p241
    %p243 = scmp.ne.s32.totalorder %s232, %s233
    %p244 = scmp.eq.s32.totalorder %s20, 0
    %p245 = por %p243, %p244
    %p246 = scmp.ne.s32.totalorder %s232, %s233
    %p247 = scmp.eq.s32.totalorder %s21, 1
    %p248 = por %p246, %p247
    %p250 = scmp.ne.s32.totalorder %s233, %s249
    %p251 = scmp.eq.s32.totalorder %s21, 0
    %p252 = por %p250, %p251
    %p253 = scmp.le.s32.totalorder 1, %s15
    %p254 = scmp.lt.s32.totalorder %s15, 3
    %p255 = pnand %p253, %p254
    %p256 = pneg %p255
    // Predicated region
    $region9: #{strip_pooling2.5} parent=5 // pred_check
      _
    $region10: #{strip_pooling2.5} parent=5 // pred_check_branch
      %258 = sbr.rel (%p255) target = $region12
    $region11: #{strip_pooling2.5} parent=5 // pred_region
      %s259 = ssub.s32 %s15, 1
      // Predicated region
      $region13: #{strip_pooling2.5} parent=11 // pred_check
        %p260 = pneg %p114
      $region14: #{strip_pooling2.5} parent=11 // pred_check_branch
        %262 = sbr.rel (%p260) target = $region16
      $region15: #{strip_pooling2.5} parent=11 // pred_region
        _
      $region16: #{strip_pooling2.5} parent=11 // pred_fallthru
        _
      // Predicated region
      $region17: #{strip_pooling2.5} parent=11 // pred_check
        %p263 = pneg %p135
      $region18: #{strip_pooling2.5} parent=11 // pred_check_branch
        %265 = sbr.rel (%p263) target = $region20
      $region19: #{strip_pooling2.5} parent=11 // pred_region
        _
      $region20: #{strip_pooling2.5} parent=11 // pred_fallthru
        _
      // Predicated region
      $region21: #{strip_pooling2.5} parent=11 // pred_check
        %p266 = pneg %p156
      $region22: #{strip_pooling2.5} parent=11 // pred_check_branch
        %268 = sbr.rel (%p266) target = $region24
      $region23: #{strip_pooling2.5} parent=11 // pred_region
        _
      $region24: #{strip_pooling2.5} parent=11 // pred_fallthru
        _
      // Predicated region
      $region25: #{strip_pooling2.5} parent=11 // pred_check
        %p269 = pneg %p177
      $region26: #{strip_pooling2.5} parent=11 // pred_check_branch
        %271 = sbr.rel (%p269) target = $region28
      $region27: #{strip_pooling2.5} parent=11 // pred_region
        _
      $region28: #{strip_pooling2.5} parent=11 // pred_fallthru
        _
      // Predicated region
      $region29: #{strip_pooling2.5} parent=11 // pred_check
        %p272 = pneg %p198
      $region30: #{strip_pooling2.5} parent=11 // pred_check_branch
        %274 = sbr.rel (%p272) target = $region32
      $region31: #{strip_pooling2.5} parent=11 // pred_region
        _
      $region32: #{strip_pooling2.5} parent=11 // pred_fallthru
        _
      // Predicated region
      $region33: #{strip_pooling2.5} parent=11 // pred_check
        %p275 = pneg %p219
      $region34: #{strip_pooling2.5} parent=11 // pred_check_branch
        %277 = sbr.rel (%p275) target = $region36
      $region35: #{strip_pooling2.5} parent=11 // pred_region
        _
      $region36: #{strip_pooling2.5} parent=11 // pred_fallthru
        _
    $region12: #{strip_pooling2.5} parent=5 // pred_fallthru
      _
    %p278 = scmp.lt.s32.totalorder %s15, 2
    // Predicated region
    $region37: #{strip_pooling2.5} parent=5 // pred_check
      %p279 = pneg %p278
    $region38: #{strip_pooling2.5} parent=5 // pred_check_branch
      %281 = sbr.rel (%p279) target = $region40
    $region39: #{strip_pooling2.5} parent=5 // pred_region
      // Predicated region
      $region41: #{strip_pooling2.5} parent=39 // pred_check
        %p282 = pneg %p35
      $region42: #{strip_pooling2.5} parent=39 // pred_check_branch
        %284 = sbr.rel (%p282) target = $region44
      $region43: #{strip_pooling2.5} parent=39 // pred_region
        %p285 = scmp.lt.s32.totalorder %s15, 1
        %s286 = scalar_select %p285, %s15, 1
        %s287 = smul.addr %s286, 36
        %s288 = smul.addr %s287, 4
        %s289 = scalar_lea.vmem %s0, %s288
      $region44: #{strip_pooling2.5} parent=39 // pred_fallthru
        _
      // Predicated region
      $region45: #{strip_pooling2.5} parent=39 // pred_check
        %p290 = pneg %p61
      $region46: #{strip_pooling2.5} parent=39 // pred_check_branch
        %292 = sbr.rel (%p290) target = $region48
      $region47: #{strip_pooling2.5} parent=39 // pred_region
        %p293 = scmp.lt.s32.totalorder %s15, 1
        %s294 = scalar_select %p293, %s15, 1
        %s295 = smul.addr %s294, 18
        %s296 = smul.addr %s295, 4
        %s297 = scalar_lea.vmem %s1, %s296
      $region48: #{strip_pooling2.5} parent=39 // pred_fallthru
        _
      // Predicated region
      $region49: #{strip_pooling2.5} parent=39 // pred_check
        %p298 = pneg %p87
      $region50: #{strip_pooling2.5} parent=39 // pred_check_branch
        %300 = sbr.rel (%p298) target = $region52
      $region51: #{strip_pooling2.5} parent=39 // pred_region
        %p301 = scmp.lt.s32.totalorder %s15, 1
        %s302 = scalar_select %p301, %s15, 1
        %s303 = smul.addr %s302, 2
        %s304 = smul.addr %s303, 8
        %s305 = scalar_lea.vmem %s2, %s304
      $region52: #{strip_pooling2.5} parent=39 // pred_fallthru
        _
    $region40: #{strip_pooling2.5} parent=5 // pred_fallthru
      _
    %p306 = scmp.le.s32.totalorder 1, %s15
    %p307 = scmp.lt.s32.totalorder %s15, 3
    %p308 = pnand %p306, %p307
    %p309 = pneg %p308
    // Predicated region
    $region53: #{strip_pooling2.5} parent=5 // pred_check
      _
    $region54: #{strip_pooling2.5} parent=5 // pred_check_branch
      %311 = sbr.rel (%p308) target = $region56
    $region55: #{strip_pooling2.5} parent=5 // pred_region
      %s312 = ssub.s32 %s15, 1
      %p313 = scmp.lt.s32.totalorder %s20, 1
      %s314 = scalar_select %p313, %s20, 1
      %s315 = smul.addr %s314, 36
      %s316 = smul.addr %s315, 4
      %s317 = scalar_lea.vmem %s0, %s316
      %p318 = pneg %p41
      %p319 = pneg %p38
      %p320 = scmp.lt.s32.totalorder %s20, 1
      %s321 = scalar_select %p320, %s20, 1
      %s322 = smul.addr %s321, 18
      %s323 = smul.addr %s322, 4
      %s324 = scalar_lea.vmem %s1, %s323
      %p325 = pneg %p67
      %p326 = pneg %p64
      %p327 = scmp.lt.s32.totalorder %s20, 1
      %s328 = scalar_select %p327, %s20, 1
      %s329 = smul.addr %s328, 2
      %s330 = smul.addr %s329, 8
      %s331 = scalar_lea.vmem %s2, %s330
      %p332 = pneg %p93
      %p333 = pneg %p90
      %p334 = pneg %p114
      %p335 = pneg %p111
      %p336 = pneg %p135
      %p337 = pneg %p132
      %p338 = pneg %p156
      %p339 = pneg %p153
      %p340 = pneg %p177
      %p341 = pneg %p174
      %p342 = pneg %p198
      %p343 = pneg %p195
      %p344 = pneg %p219
      %p345 = pneg %p216
      %p346 = pneg %p245
      %p347 = pneg %p242
      %p348 = scmp.lt.s32.totalorder %s20, 1
      %s349 = scalar_select %p348, %s20, 1
      %s350 = smul.addr %s349, 2
      %s351 = smul.addr %s350, 8
      %s352 = scalar_lea.vmem %s9, %s351
      %p353 = scmp.lt.s32.totalorder %s20, 1
      %s354 = scalar_select %p353, %s20, 1
      %s355 = smul.addr %s354, 36
      %s356 = smul.addr %s355, 4
      %s357 = scalar_lea.vmem %s0, %s356
      %p358 = scmp.lt.s32.totalorder %s20, 1
      %s359 = scalar_select %p358, %s20, 1
      %s360 = smul.addr %s359, 18
      %s361 = smul.addr %s360, 4
      %s362 = scalar_lea.vmem %s1, %s361
      %p363 = scmp.lt.s32.totalorder %s20, 1
      %s364 = scalar_select %p363, %s20, 1
      %s365 = smul.addr %s364, 2
      %s366 = smul.addr %s365, 8
      %s367 = scalar_lea.vmem %s2, %s366
      %p368 = scmp.lt.s32.totalorder %s20, 1
      %s369 = scalar_select %p368, %s20, 1
      %s370 = smul.addr %s369, 2
      %s371 = smul.addr %s370, 8
      %s372 = scalar_lea.vmem %s9, %s371
      %v374 = vld [vmem:[%s7] sm:$0xff]
      %v375 = vld [vmem:[%s7 + $0x8] sm:$0xff]
      %v376 = vld [vmem:[%s7 + $0x10] sm:$0xff]
      %v377 = vld [vmem:[%s8] sm:$0xff]
      %v378 = vld [vmem:[%s8 + $0x8] sm:$0xff]
      %v379 = vld [vmem:[%s8 + $0x10] sm:$0xff]
      %v380 = vld [vmem:[%s3] sm:$0xff]
      %v381 = vld [vmem:[%s357] sm:$0xff]
      %v382 = vld [vmem:[%s357 + $0x8] sm:$0xff]
      %v383 = vld [vmem:[%s357 + $0x10] sm:$0xff]
      %v384 = vld [vmem:[%s357 + $0x18] sm:$0xff]
      %v385 = vld [vmem:[%s357 + $0x20] sm:$0xff]
      %v386 = vld [vmem:[%s357 + $0x28] sm:$0xff]
      %v387 = vld [vmem:[%s357 + $0x30] sm:$0xff]
      %v388 = vld [vmem:[%s357 + $0x38] sm:$0xff]
      %v389 = vld [vmem:[%s357 + $0x40] sm:$0xff]
      %v390 = vld [vmem:[%s357 + $0x48] sm:$0xff]
      %v391 = vld [vmem:[%s357 + $0x50] sm:$0xff]
      %v392 = vld [vmem:[%s357 + $0x58] sm:$0xff]
      %v393 = vld [vmem:[%s357 + $0x60] sm:$0xff]
      %v394 = vld [vmem:[%s357 + $0x68] sm:$0xff]
      %v395 = vld [vmem:[%s357 + $0x70] sm:$0xff]
      %v396 = vld [vmem:[%s357 + $0x78] sm:$0xff]
      %v397 = vld [vmem:[%s357 + $0x80] sm:$0xff]
      %v398 = vld [vmem:[%s357 + $0x88] sm:$0xff]
      %v400 = vunpack.c.l.b16 %v380
      %v401 = vunpack.c.h.b16 %v380
      %v402 = vpack.c.b16 %v400, %v400
      %v403 = vpack.c.b16 %v401, %v401
      %v423 = vunpack.c.l.b16 %v381
      %v424 = vunpack.c.h.b16 %v381
      %v425 = vunpack.c.l.b16 %v382
      %v426 = vunpack.c.h.b16 %v382
      %v427 = vunpack.c.l.b16 %v383
      %v428 = vunpack.c.h.b16 %v383
      %v429 = vunpack.c.l.b16 %v384
      %v430 = vunpack.c.h.b16 %v384
      %v431 = vunpack.c.l.b16 %v385
      %v432 = vunpack.c.h.b16 %v385
      %v433 = vunpack.c.l.b16 %v386
      %v434 = vunpack.c.h.b16 %v386
      %v435 = vunpack.c.l.b16 %v387
      %v436 = vunpack.c.h.b16 %v387
      %v437 = vunpack.c.l.b16 %v388
      %v438 = vunpack.c.h.b16 %v388
      %v439 = vunpack.c.l.b16 %v389
      %v440 = vunpack.c.h.b16 %v389
      %v441 = vunpack.c.l.b16 %v390
      %v442 = vunpack.c.h.b16 %v390
      %v443 = vunpack.c.l.b16 %v391
      %v444 = vunpack.c.h.b16 %v391
      %v445 = vunpack.c.l.b16 %v392
      %v446 = vunpack.c.h.b16 %v392
      %v447 = vunpack.c.l.b16 %v393
      %v448 = vunpack.c.h.b16 %v393
      %v449 = vunpack.c.l.b16 %v394
      %v450 = vunpack.c.h.b16 %v394
      %v451 = vunpack.c.l.b16 %v395
      %v452 = vunpack.c.h.b16 %v395
      %v453 = vunpack.c.l.b16 %v396
      %v454 = vunpack.c.h.b16 %v396
      %v455 = vunpack.c.l.b16 %v397
      %v456 = vunpack.c.h.b16 %v397
      %v457 = vunpack.c.l.b16 %v398
      %v458 = vunpack.c.h.b16 %v398
      %v459 = vpack.c.b16 %v425, %v423
      %v460 = vpack.c.b16 %v426, %v424
      %v461 = vpack.c.b16 %v429, %v427
      %v462 = vpack.c.b16 %v430, %v428
      %v463 = vpack.c.b16 %v433, %v431
      %v464 = vpack.c.b16 %v434, %v432
      %v465 = vpack.c.b16 %v437, %v435
      %v466 = vpack.c.b16 %v438, %v436
      %v467 = vpack.c.b16 %v441, %v439
      %v468 = vpack.c.b16 %v442, %v440
      %v469 = vpack.c.b16 %v445, %v443
      %v470 = vpack.c.b16 %v446, %v444
      %v471 = vpack.c.b16 %v449, %v447
      %v472 = vpack.c.b16 %v450, %v448
      %v473 = vpack.c.b16 %v453, %v451
      %v474 = vpack.c.b16 %v454, %v452
      %v475 = vpack.c.b16 %v457, %v455
      %v476 = vpack.c.b16 %v458, %v456
      %vm495 = vcmask 130048
      %v497 = vsel %vm495, %v403, 0
      %499 = vmatprep.subr.bf16.mxu0 %v460
      %500 = vmatpush1.bf16.msra.mxu0 %v459
      %501 = vmatprep.subr.bf16.mxu0 %v462
      %502 = vmatpush1.bf16.msra.mxu0 %v461
      %503 = vmatprep.subr.bf16.mxu0 %v464
      %504 = vmatpush1.bf16.msra.mxu0 %v463
      %505 = vmatprep.subr.bf16.mxu0 %v466
      %506 = vmatpush1.bf16.msra.mxu0 %v465
      %507 = vmatprep.subr.bf16.mxu0 %v468
      %508 = vmatpush1.bf16.msra.mxu0 %v467
      %509 = vmatprep.subr.bf16.mxu0 %v470
      %510 = vmatpush1.bf16.msra.mxu0 %v469
      %511 = vmatprep.subr.bf16.mxu0 %v472
      %512 = vmatpush1.bf16.msra.mxu0 %v471
      %513 = vmatprep.subr.bf16.mxu0 %v474
      %514 = vmatpush1.bf16.msra.mxu0 %v473
      %515 = vmatprep.subr.bf16.mxu0 %v476
      %516 = vmatpush1.bf16.msra.mxu0 %v475
      %517 = vmatprep.subr.bf16.mxu0 0
      %518 = vmatpush1.bf16.msra.mxu0 0
      %519 = vmatprep.subr.bf16.mxu0 0
      %520 = vmatpush1.bf16.msra.mxu0 0
      %521 = vmatprep.subr.bf16.mxu0 0
      %522 = vmatpush1.bf16.msra.mxu0 0
      %523 = vmatprep.subr.bf16.mxu0 0
      %524 = vmatpush1.bf16.msra.mxu0 0
      %525 = vmatprep.subr.bf16.mxu0 0
      %526 = vmatpush1.bf16.msra.mxu0 0
      %527 = vmatprep.subr.bf16.mxu0 0
      %528 = vmatpush1.bf16.msra.mxu0 0
      %529 = vmatprep.subr.bf16.mxu0 0
      %530 = vmatpush1.bf16.msra.mxu0 0
      %531 = vmatprep.mubr.bf16.mxu0 %v497
      %532 = vmatmul.mubr.bf16.gmra.mrb[0].mxu0 %v402
      %v533 = vpop.f32.mrb[0].mxu0
      %v534 = vadd.f32 0.0, %v533
      %v535 = vpop.f32.mrb[0].mxu0
      %v536 = vadd.f32 0.0, %v535
      %v537 = vpop.f32.mrb[0].mxu0
      %v538 = vpop.f32.mrb[0].mxu0
      %539 = vdwg.mxu0
      %541 = vset.pattern.permute.xlu0 0
      %542 = vperm.xlu0 %541, %v374
      %v543 = vpop.permute.xlu0 %542
      %v545 = vmul.f32 %v534, %v543
      %v546 = vmul.f32 %v536, %v543
      %548 = vset.pattern.permute.xlu0 0
      %549 = vperm.xlu0 %548, %v377
      %v550 = vpop.permute.xlu0 %549
      %v552 = vadd.f32 %v545, %v550
      %v553 = vadd.f32 %v546, %v550
      %v554 = vmax.f32 %v552, 0.0
      %v555 = vmax.f32 %v553, 0.0
      %v556 = vld [vmem:[%s4] sm:$0xf]
      %v557 = vld [vmem:[%s362] sm:$0xff]
      %v558 = vld [vmem:[%s362 + $0x8] sm:$0xff]
      %v559 = vld [vmem:[%s362 + $0x10] sm:$0xff]
      %v560 = vld [vmem:[%s362 + $0x18] sm:$0xff]
      %v561 = vld [vmem:[%s362 + $0x20] sm:$0xff]
      %v562 = vld [vmem:[%s362 + $0x28] sm:$0xff]
      %v563 = vld [vmem:[%s362 + $0x30] sm:$0xff]
      %v564 = vld [vmem:[%s362 + $0x38] sm:$0xff]
      %v565 = vld [vmem:[%s362 + $0x40] sm:$0xff]
      %v575 = vunpack.c.l.b16 %v557
      %v576 = vunpack.c.h.b16 %v557
      %v577 = vunpack.c.l.b16 %v558
      %v578 = vunpack.c.h.b16 %v558
      %v579 = vunpack.c.l.b16 %v559
      %v580 = vunpack.c.h.b16 %v559
      %v581 = vunpack.c.l.b16 %v560
      %v582 = vunpack.c.h.b16 %v560
      %v583 = vunpack.c.l.b16 %v561
      %v584 = vunpack.c.h.b16 %v561
      %v585 = vunpack.c.l.b16 %v562
      %v586 = vunpack.c.h.b16 %v562
      %v587 = vunpack.c.l.b16 %v563
      %v588 = vunpack.c.h.b16 %v563
      %v589 = vunpack.c.l.b16 %v564
      %v590 = vunpack.c.h.b16 %v564
      %v591 = vunpack.c.l.b16 %v565
      %v592 = vunpack.c.h.b16 %v565
      %v593 = vpack.c.b16 %v577, %v575
      %v594 = vpack.c.b16 %v578, %v576
      %v595 = vpack.c.b16 %v581, %v579
      %v596 = vpack.c.b16 %v582, %v580
      %v597 = vpack.c.b16 %v585, %v583
      %v598 = vpack.c.b16 %v586, %v584
      %v599 = vpack.c.b16 %v589, %v587
      %v600 = vpack.c.b16 %v590, %v588
      %v601 = vpack.c.b16 %v591, %v591
      %v602 = vpack.c.b16 %v592, %v592
      %vm611 = vcmask 588800
      %v613 = vsel %vm611, %v556, 0
      %vm615 = vcmask 1043456
      %v617 = vsel %vm615, %v601, 0
      %v620 = vsel %vm615, %v602, 0
      %622 = vmatprep.subr.bf16.mxu0 %v594
      %623 = vmatpush1.bf16.msra.mxu0 %v593
      %624 = vmatprep.subr.bf16.mxu0 %v596
      %625 = vmatpush1.bf16.msra.mxu0 %v595
      %626 = vmatprep.subr.bf16.mxu0 %v598
      %627 = vmatpush1.bf16.msra.mxu0 %v597
      %628 = vmatprep.subr.bf16.mxu0 %v600
      %629 = vmatpush1.bf16.msra.mxu0 %v599
      %630 = vmatprep.subr.bf16.mxu0 %v620
      %631 = vmatpush1.bf16.msra.mxu0 %v617
      %632 = vmatprep.subr.bf16.mxu0 0
      %633 = vmatpush1.bf16.msra.mxu0 0
      %634 = vmatprep.subr.bf16.mxu0 0
      %635 = vmatpush1.bf16.msra.mxu0 0
      %636 = vmatprep.subr.bf16.mxu0 0
      %637 = vmatpush1.bf16.msra.mxu0 0
      %638 = vmatprep.subr.bf16.mxu0 0
      %639 = vmatpush1.bf16.msra.mxu0 0
      %640 = vmatprep.subr.bf16.mxu0 0
      %641 = vmatpush1.bf16.msra.mxu0 0
      %642 = vmatprep.subr.bf16.mxu0 0
      %643 = vmatpush1.bf16.msra.mxu0 0
      %644 = vmatprep.subr.bf16.mxu0 0
      %645 = vmatpush1.bf16.msra.mxu0 0
      %646 = vmatprep.subr.bf16.mxu0 0
      %647 = vmatpush1.bf16.msra.mxu0 0
      %648 = vmatprep.subr.bf16.mxu0 0
      %649 = vmatpush1.bf16.msra.mxu0 0
      %650 = vmatprep.subr.bf16.mxu0 0
      %651 = vmatpush1.bf16.msra.mxu0 0
      %652 = vmatprep.subr.bf16.mxu0 0
      %653 = vmatpush1.bf16.msra.mxu0 0
      %654 = vmatprep.mubr.bf16.mxu0 0
      %655 = vmatmul.mubr.bf16.gmra.mrb[0].mxu0 %v613
      %v656 = vpop.f32.mrb[0].mxu0
      %v657 = vadd.f32 0.0, %v656
      %v658 = vpop.f32.mrb[0].mxu0
      %v659 = vadd.f32 0.0, %v658
      %v660 = vpop.f32.mrb[0].mxu0
      %v661 = vpop.f32.mrb[0].mxu0
      %662 = vdwg.mxu0
      %664 = vset.pattern.permute.xlu0 0
      %665 = vperm.xlu0 %664, %v375
      %v666 = vpop.permute.xlu0 %665
      %v668 = vmul.f32 %v657, %v666
      %v669 = vmul.f32 %v659, %v666
      %671 = vset.pattern.permute.xlu0 0
      %672 = vperm.xlu0 %671, %v378
      %v673 = vpop.permute.xlu0 %672
      %v675 = vadd.f32 %v668, %v673
      %v676 = vadd.f32 %v669, %v673
      %v677 = vmax.f32 %v675, 0.0
      %v678 = vmax.f32 %v676, 0.0
      %v679 = vld [vmem:[%s367] sm:$0xff]
      %v680 = vld [vmem:[%s367 + $0x8] sm:$0xff]
      %v681 = vmul.f32 %v679, %v677
      %v682 = vmul.f32 %v680, %v678
      %v683 = vld [vmem:[%s5] sm:$0xf]
      %v684 = vld [vmem:[%s6] sm:$0xf]
      %v685 = vpack.c.bf16 %v554, %v554
      %v686 = vpack.c.bf16 %v555, %v555
      %v687 = vpack.c.bf16 %v681, %v681
      %v688 = vpack.c.bf16 %v682, %v682
      %vm689 = vcmask 64512
      %v691 = vsel %vm689, %v684, 0
      %v694 = vsel %vm615, %v687, 0
      %v697 = vsel %vm615, %v688, 0
      %699 = vmatprep.subr.bf16.mxu0 %v697
      %700 = vmatpush1.bf16.msra.mxu0 %v694
      %701 = vmatprep.subr.bf16.mxu0 0
      %702 = vmatpush1.bf16.msra.mxu0 0
      %703 = vmatprep.subr.bf16.mxu0 0
      %704 = vmatpush1.bf16.msra.mxu0 0
      %705 = vmatprep.subr.bf16.mxu0 0
      %706 = vmatpush1.bf16.msra.mxu0 0
      %707 = vmatprep.subr.bf16.mxu0 0
      %708 = vmatpush1.bf16.msra.mxu0 0
      %709 = vmatprep.subr.bf16.mxu0 0
      %710 = vmatpush1.bf16.msra.mxu0 0
      %711 = vmatprep.subr.bf16.mxu0 0
      %712 = vmatpush1.bf16.msra.mxu0 0
      %713 = vmatprep.subr.bf16.mxu0 0
      %714 = vmatpush1.bf16.msra.mxu0 0
      %715 = vmatprep.subr.bf16.mxu0 0
      %716 = vmatpush1.bf16.msra.mxu0 0
      %717 = vmatprep.subr.bf16.mxu0 0
      %718 = vmatpush1.bf16.msra.mxu0 0
      %719 = vmatprep.subr.bf16.mxu0 0
      %720 = vmatpush1.bf16.msra.mxu0 0
      %721 = vmatprep.subr.bf16.mxu0 0
      %722 = vmatpush1.bf16.msra.mxu0 0
      %723 = vmatprep.subr.bf16.mxu0 0
      %724 = vmatpush1.bf16.msra.mxu0 0
      %725 = vmatprep.subr.bf16.mxu0 0
      %726 = vmatpush1.bf16.msra.mxu0 0
      %727 = vmatprep.subr.bf16.mxu0 0
      %728 = vmatpush1.bf16.msra.mxu0 0
      %729 = vmatprep.subr.bf16.mxu0 0
      %730 = vmatpush1.bf16.msra.mxu0 0
      %731 = vmatprep.mubr.bf16.mxu0 0
      %732 = vmatmul.mubr.bf16.gmra.mrb[0].mxu0 %v691
      %v733 = vpop.f32.mrb[0].mxu0
      %v734 = vadd.f32 0.0, %v733
      %v735 = vpop.f32.mrb[0].mxu0
      %v736 = vadd.f32 0.0, %v735
      %v737 = vpop.f32.mrb[0].mxu0
      %v738 = vpop.f32.mrb[0].mxu0
      %739 = vdwg.mxu0
      %v741 = vsel %vm689, %v683, 0
      %v744 = vsel %vm615, %v685, 0
      %v747 = vsel %vm615, %v686, 0
      %749 = vmatprep.subr.bf16.mxu0 %v747
      %750 = vmatpush1.bf16.msra.mxu0 %v744
      %751 = vmatprep.subr.bf16.mxu0 0
      %752 = vmatpush1.bf16.msra.mxu0 0
      %753 = vmatprep.subr.bf16.mxu0 0
      %754 = vmatpush1.bf16.msra.mxu0 0
      %755 = vmatprep.subr.bf16.mxu0 0
      %756 = vmatpush1.bf16.msra.mxu0 0
      %757 = vmatprep.subr.bf16.mxu0 0
      %758 = vmatpush1.bf16.msra.mxu0 0
      %759 = vmatprep.subr.bf16.mxu0 0
      %760 = vmatpush1.bf16.msra.mxu0 0
      %761 = vmatprep.subr.bf16.mxu0 0
      %762 = vmatpush1.bf16.msra.mxu0 0
      %763 = vmatprep.subr.bf16.mxu0 0
      %764 = vmatpush1.bf16.msra.mxu0 0
      %765 = vmatprep.subr.bf16.mxu0 0
      %766 = vmatpush1.bf16.msra.mxu0 0
      %767 = vmatprep.subr.bf16.mxu0 0
      %768 = vmatpush1.bf16.msra.mxu0 0
      %769 = vmatprep.subr.bf16.mxu0 0
      %770 = vmatpush1.bf16.msra.mxu0 0
      %771 = vmatprep.subr.bf16.mxu0 0
      %772 = vmatpush1.bf16.msra.mxu0 0
      %773 = vmatprep.subr.bf16.mxu0 0
      %774 = vmatpush1.bf16.msra.mxu0 0
      %775 = vmatprep.subr.bf16.mxu0 0
      %776 = vmatpush1.bf16.msra.mxu0 0
      %777 = vmatprep.subr.bf16.mxu0 0
      %778 = vmatpush1.bf16.msra.mxu0 0
      %779 = vmatprep.subr.bf16.mxu0 0
      %780 = vmatpush1.bf16.msra.mxu0 0
      %781 = vmatprep.mubr.bf16.mxu0 0
      %782 = vmatmul.mubr.bf16.gmra.mrb[0].mxu0 %v741
      %v783 = vpop.f32.mrb[0].mxu0
      %v784 = vadd.f32 %v734, %v783
      %v785 = vpop.f32.mrb[0].mxu0
      %v786 = vadd.f32 %v736, %v785
      %v787 = vpop.f32.mrb[0].mxu0
      %v788 = vpop.f32.mrb[0].mxu0
      %789 = vdwg.mxu0
      %791 = vset.pattern.permute.xlu0 0
      %792 = vperm.xlu0 %791, %v376
      %v793 = vpop.permute.xlu0 %792
      %v795 = vmul.f32 %v784, %v793
      %v796 = vmul.f32 %v786, %v793
      %798 = vset.pattern.permute.xlu0 0
      %799 = vperm.xlu0 %798, %v379
      %v800 = vpop.permute.xlu0 %799
      %v802 = vadd.f32 %v795, %v800
      %v803 = vadd.f32 %v796, %v800
      %v804 = vadd.f32 %v679, %v802
      %v805 = vadd.f32 %v680, %v803
      %v806 = vmax.f32 %v804, 0.0
      %v807 = vmax.f32 %v805, 0.0
      %808 = vst [vmem:[%s372] sm:$0xff] %v806
      %809 = vst [vmem:[%s372 + $0x8] sm:$0xff] %v807
      %p810 = scmp.lt.s32.totalorder %s20, 1
      %s811 = scalar_select %p810, %s20, 1
      %s812 = smul.addr %s811, 2
      %s813 = smul.addr %s812, 8
      %s814 = scalar_lea.vmem %s9, %s813
      // Predicated region
      $region57: #{strip_pooling2.5} parent=55 // pred_check
        %p815 = pneg %p242
      $region58: #{strip_pooling2.5} parent=55 // pred_check_branch
        %817 = sbr.rel (%p815) target = $region60
      $region59: #{strip_pooling2.5} parent=55 // pred_region
        _
      $region60: #{strip_pooling2.5} parent=55 // pred_fallthru
        _
    $region56: #{strip_pooling2.5} parent=5 // pred_fallthru
      _
    %p818 = scmp.le.s32.totalorder 2, %s15
    // Predicated region
    $region61: #{strip_pooling2.5} parent=5 // pred_check
      %p819 = pneg %p818
    $region62: #{strip_pooling2.5} parent=5 // pred_check_branch
      %821 = sbr.rel (%p819) target = $region64
    $region63: #{strip_pooling2.5} parent=5 // pred_region
      %s822 = ssub.s32 %s15, 2
      // Predicated region
      $region65: #{strip_pooling2.5} parent=63 // pred_check
        %p823 = pneg %p248
      $region66: #{strip_pooling2.5} parent=63 // pred_check_branch
        %825 = sbr.rel (%p823) target = $region68
      $region67: #{strip_pooling2.5} parent=63 // pred_region
        %p826 = scmp.lt.s32.totalorder %s21, 1
        %s827 = scalar_select %p826, %s21, 1
        %s828 = smul.addr %s827, 2
        %s829 = smul.addr %s828, 8
        %s830 = scalar_lea.vmem %s9, %s829
      $region68: #{strip_pooling2.5} parent=63 // pred_fallthru
        _
    $region64: #{strip_pooling2.5} parent=5 // pred_fallthru
      _
  $region6: #{strip_pooling2.5} parent=0 // loop_footer
    %s19 = sadd.s32 1, %s15
  $region7: #{strip_pooling2.5} parent=0 // loop_footer_branch
    %14 = sbr.rel target = $region3
  $region8: #{strip_pooling2.5} parent=0 // loop_exit
    _

</llo_original>
